<compile_context>
chip_gen: v6e
topology: v6e:2x2x1
jax: 0.10.0
libtpu: 0.0.40
codegen_flags: <defaults>
</compile_context>

<pallas_src>
from typing import NamedTuple

import numpy as np

import jax
import jax.numpy as jnp
from jax.experimental import pallas as pl
from jax.experimental.pallas import tpu as pltpu

# ---------------- static problem sizes ----------------
M = 32                      # irreps_in = "32x0e"
F = 4                       # mul_factor
D = M // F                  # per-axis scalar channels after MulToAxis -> 8
S = D * (D + 1) // 2        # symmetric-square size                    -> 36
E = F * D * D               # expanded outer-product width per residue -> 256
CIN = M + F * S             # concat width into gate_linear            -> 176

F_PACK = 4                  # residues packed per 128-lane row
LANES = F_PACK * M          # 128  (lane-dense blocks)
TILE_ROWS = 256             # packed rows per grid step (= 1024 residues)


class ResidueState(NamedTuple):
    coords: jnp.ndarray
    features: jnp.ndarray


class FoldedParams(NamedTuple):
    w1_bd: jnp.ndarray      # (128, 128)  bf16  linear path (block-diag)
    w2_bd: jnp.ndarray      # (1024, 128) bf16  sym-square path, sel folded in
    gamma_bd: jnp.ndarray   # (4, 128)    f32   c_noise expansion * gamma folded
    beta_t: jnp.ndarray     # (1, 128)    f32


# -------- constant projection matrices (numpy, built once at import) --------
def _sym_square_sel() -> np.ndarray:
    """(D*D, S): projects a full DxD outer product onto the ordered
    upper-triangular (symmetric-square) components."""
    # TODO(synk): sqrt(2) off-diagonal factor approximates e3nn TensorSquare
    # path/irrep normalization (exact constants depend on e3nn's norm mode).
    sel = np.zeros((D * D, S), np.float32)
    col = 0
    for i in range(D):
        for j in range(i, D):
            w = 1.0 if i == j else np.sqrt(2.0) * 0.5
            sel[i * D + j, col] += w
            sel[j * D + i, col] += w
            col += 1
    return sel


def _expansion_mats():
    """(M, E) 0/1 matrices so that (x @ P1) * (x @ P2) equals the per-axis
    outer product laid out as [f, i, j] -> f*D*D + i*D + j.  Replaces the
    MulToAxis reshape + 3D broadcast with lane-dense MXU matmuls."""
    p1 = np.zeros((M, E), np.float32)
    p2 = np.zeros((M, E), np.float32)
    for f in range(F):
        for i in range(D):
            for j in range(D):
                k = f * D * D + i * D + j
                p1[f * D + i, k] = 1.0
                p2[f * D + j, k] = 1.0
    return p1, p2


_SEL = _sym_square_sel()
_P1, _P2 = _expansion_mats()
_EYE_PACK = np.eye(F_PACK, dtype=np.float32)
# Block-diagonal (per packed residue) expansion constants.  0/1 entries are
# exact in bf16, so store them as bf16 MXU operands.
P1_BD = jnp.asarray(np.kron(_EYE_PACK, _P1), jnp.bfloat16)      # (128, 1024)
P2_BD = jnp.asarray(np.kron(_EYE_PACK, _P2), jnp.bfloat16)      # (128, 1024)


# ---------------- one-time parameter folding (init, NOT per forward) --------
def fold_params(w_lin, gamma, beta) -> FoldedParams:
    """Fold (a) e3nn Linear 1/sqrt(fan_in) norm, (b) the symmetric-square
    selection matrix, (c) the 4-residue lane-packing block-diagonal
    replication, and (d) the c_noise lane-expansion * gamma, once."""
    w = jnp.asarray(w_lin, jnp.float32) / np.sqrt(np.float32(CIN))
    w1 = w[:M, :]                                   # (32, 32)  linear path
    wg = w[M:, :].reshape(F, S, M)                  # (4, 36, 32) squared path
    # sel folded into the squared-path weights -> (E, M)
    w2 = jnp.einsum("as,fsm->fam", jnp.asarray(_SEL), wg).reshape(E, M)
    eye = jnp.asarray(_EYE_PACK)
    gamma = jnp.asarray(gamma, jnp.float32).reshape(1, M)
    beta = jnp.asarray(beta, jnp.float32).reshape(1, M)
    return FoldedParams(
        w1_bd=jnp.kron(eye, w1).astype(jnp.bfloat16),       # (128, 128)
        w2_bd=jnp.kron(eye, w2).astype(jnp.bfloat16),       # (1024, 128)
        gamma_bd=jnp.kron(eye, gamma),                      # (4, 128) f32
        beta_t=jnp.tile(beta, (1, F_PACK)),                 # (1, 128) f32
    )


# ---------------- Pallas kernel ----------------
def self_interaction_kernel(xp_ref, cn_ref, w1_ref, w2_ref, p1_ref, p2_ref,
                            gamma_ref, beta_ref, o_ref):
    # bf16 MXU operands, f32 accumulation everywhere.
    xp = xp_ref[...].astype(jnp.bfloat16)                          # (T, 128)

    # gate_linear, linear path.
    y = jnp.dot(xp, w1_ref[...], preferred_element_type=jnp.float32)   # (T, 128)

    # MulToAxis + TensorSquare + (sel-folded) squared path, chunked per packed
    # residue (256-lane groups) so live (T, E) intermediates stay small.
    for r in range(F_PACK):
        lo = r * E
        a = jnp.dot(xp, p1_ref[:, lo:lo + E],
                    preferred_element_type=jnp.float32)            # (T, 256) f32
        b = jnp.dot(xp, p2_ref[:, lo:lo + E],
                    preferred_element_type=jnp.float32)            # (T, 256) f32
        # Keep the self-product in f32; cast only the result for the bf16 dot.
        outer = (a * b).astype(jnp.bfloat16)
        y = y + jnp.dot(outer, w2_ref[lo:lo + E, :],
                        preferred_element_type=jnp.float32)        # (T, 128) f32

    # Gate: all-scalar irreps -> elementwise SiLU (EUP).
    y = y * jax.nn.sigmoid(y)

    # NoiseConditionalScaling: scale = c_noise * gamma + beta.  The 4->128
    # lane expansion and gamma are folded into one tiny (T,4)@(4,128) matmul.
    scale = jnp.dot(cn_ref[...].astype(jnp.float32), gamma_ref[...],
                    preferred_element_type=jnp.float32) + beta_ref[...]
    o_ref[...] = (y * scale).astype(o_ref.dtype)


# ---------------- wrapper ----------------
def _pick_tile(n_rows: int, tile_rows: int) -> int:
    """Largest multiple-of-8 divisor of n_rows, capped by tile_rows and (when
    n_rows is large enough) capped so the grid has >= 2 steps (v7x megacore)."""
    cap = min(tile_rows, n_rows)
    if n_rows >= 16:
        cap = min(cap, (n_rows // 2) // 8 * 8)
    best = 0
    for cand in range(8, cap + 1, 8):
        if n_rows % cand == 0:
            best = cand
    return best if best > 0 else n_rows


def self_interaction(residue_state: ResidueState, c_noise, params: FoldedParams,
                     *, tile_rows: int = TILE_ROWS) -> ResidueState:
    x = residue_state.features                                    # (N, M)
    n = x.shape[0]
    assert n % F_PACK == 0, "residue count must be a multiple of 4"
    n_rows = n // F_PACK                                          # packed rows
    # TODO(synk): pad the final tile instead of requiring clean divisibility.
    t = _pick_tile(n_rows, tile_rows)

    # Lane-dense packing: 4 residues (4 x 32 channels) per 128-lane row.
    xp = x.reshape(n_rows, LANES)
    # Compact c_noise: one scalar per packed residue, expanded in-kernel.
    cn = c_noise.reshape(n_rows, F_PACK)

    row_spec = pl.BlockSpec((t, LANES), lambda i: (i, 0))
    cn_spec = pl.BlockSpec((t, F_PACK), lambda i: (i, 0))
    # Constant operands: index_map returns (0, 0) every step, so the Pallas
    # pipeline keeps the block resident and skips per-step re-DMA.
    full = lambda arr: pl.BlockSpec(arr.shape, lambda i: (0, 0))

    out = pl.pallas_call(
        self_interaction_kernel,
        out_shape=jax.ShapeDtypeStruct((n_rows, LANES), x.dtype),
        grid_spec=pltpu.PrefetchScalarGridSpec(
            num_scalar_prefetch=0,
            grid=(n_rows // t,),
            in_specs=[
                row_spec,                    # packed features
                cn_spec,                     # compact c_noise
                full(params.w1_bd),          # folded linear weights (bf16)
                full(params.w2_bd),          # folded sym-square weights (bf16)
                full(P1_BD),                 # expansion constants (bf16)
                full(P2_BD),
                full(params.gamma_bd),       # noise-scaling affine (f32)
                full(params.beta_t),
            ],
            out_specs=row_spec,
        ),
        compiler_params=pltpu.CompilerParams(
            dimension_semantics=("parallel",),
            vmem_limit_bytes=32 * 1024 * 1024),
        # TODO(synk): if the surrounding model tolerates it, keep features
        # bf16 end-to-end to halve the feature/output DMA streams.
    )(xp, cn, params.w1_bd, params.w2_bd, P1_BD, P2_BD,
      params.gamma_bd, params.beta_t)

    return residue_state._replace(features=out.reshape(n, M))


# ---------------- pure-JAX reference (original, unfolded formulation) -------
def self_interaction_ref(residue_state, c_noise, w_lin, gamma, beta):
    x = residue_state.features.astype(jnp.float32)
    n = x.shape[0]
    w = jnp.asarray(w_lin, jnp.float32) / np.sqrt(np.float32(CIN))
    xa = x.reshape(n * F, D)
    outer = (xa[:, :, None] * xa[:, None, :]).reshape(n * F, D * D)
    sq = jnp.matmul(outer, jnp.asarray(_SEL)).reshape(n, F * S)
    feats = jnp.concatenate([x, sq], axis=-1)
    y = jnp.matmul(feats, w)
    y = y * jax.nn.sigmoid(y)
    scale = c_noise * gamma + beta
    return y * scale


if __name__ == "__main__":
    N = 256   # residues -> 64 packed rows -> 2 grid steps (both v7x TCs usable)
    key = jax.random.PRNGKey(0)
    k1, k2, k3, k4, k5, k6 = jax.random.split(key, 6)

    coords = jax.random.normal(k1, (N, 3), jnp.float32)
    features = jax.random.normal(k2, (N, M), jnp.float32)
    c_noise = jax.random.uniform(k3, (N, 1), jnp.float32)

    # Deterministic parameter init (synthetic, not a checkpoint).
    w_lin = jax.random.normal(k4, (CIN, M), jnp.float32)
    # TODO(synk): NoiseConditionalScaling class body not provided; modeled as a
    # per-channel affine scale of the features by c_noise.
    gamma = jax.random.normal(k5, (1, M), jnp.float32) * 0.1 + 1.0
    beta = jax.random.normal(k6, (1, M), jnp.float32) * 0.1

    state = ResidueState(coords=coords, features=features)
    params = fold_params(w_lin, gamma, beta)     # one-time folding at init

    out_state = self_interaction(state, c_noise, params)
    jax.block_until_ready(out_state.features)

    with jax.default_matmul_precision("highest"):
        ref = self_interaction_ref(state, c_noise, w_lin, gamma, beta)

    assert out_state.features.shape == (N, M)
    # Tolerance covers bf16 MXU operands (weights + activations) with f32
    # accumulation; structural errors would be O(1), well above this.
    assert jnp.allclose(out_state.features, ref, atol=5e-2, rtol=5e-2)
    assert jnp.array_equal(out_state.coords, coords)

    print("KERNEL_OK")
</pallas_src>

<mosaic_0001>
module attributes {stable_mosaic.version = 11 : i64} {
  func.func @self_interaction_kernel(%arg0: i32, %arg1: memref<32x128xf32, #tpu.memory_space<vmem>>, %arg2: memref<32x4xf32, #tpu.memory_space<vmem>>, %arg3: memref<128x128xbf16, #tpu.memory_space<vmem>>, %arg4: memref<1024x128xbf16, #tpu.memory_space<vmem>>, %arg5: memref<128x1024xbf16, #tpu.memory_space<vmem>>, %arg6: memref<128x1024xbf16, #tpu.memory_space<vmem>>, %arg7: memref<4x128xf32, #tpu.memory_space<vmem>>, %arg8: memref<1x128xf32, #tpu.memory_space<vmem>>, %arg9: memref<32x128xf32, #tpu.memory_space<vmem>>) attributes {dimension_semantics = [#tpu.dimension_semantics<parallel>], iteration_bounds = array<i64: 2>, scalar_prefetch = 0 : i64, scratch_operands = 0 : i64, tpu.core_type = #tpu.core_type<tc>, window_params = [{transform_indices = @transform_0, window_bounds = array<i64: 32, 128>}, {transform_indices = @transform_1, window_bounds = array<i64: 32, 4>}, {pipeline_mode = #tpu.pipeline_mode<synchronous>, transform_indices = @transform_2, window_bounds = array<i64: 128, 128>}, {pipeline_mode = #tpu.pipeline_mode<synchronous>, transform_indices = @transform_3, window_bounds = array<i64: 1024, 128>}, {pipeline_mode = #tpu.pipeline_mode<synchronous>, transform_indices = @transform_4, window_bounds = array<i64: 128, 1024>}, {pipeline_mode = #tpu.pipeline_mode<synchronous>, transform_indices = @transform_5, window_bounds = array<i64: 128, 1024>}, {pipeline_mode = #tpu.pipeline_mode<synchronous>, transform_indices = @transform_6, window_bounds = array<i64: 4, 128>}, {pipeline_mode = #tpu.pipeline_mode<synchronous>, transform_indices = @transform_7, window_bounds = array<i64: 1, 128>}, {transform_indices = @transform_8, window_bounds = array<i64: 32, 128>}]} {
    %c0 = arith.constant 0 : index
    %c0_0 = arith.constant 0 : index
    %0 = vector.load %arg1[%c0, %c0_0] : memref<32x128xf32, #tpu.memory_space<vmem>>, vector<32x128xf32>
    %1 = arith.truncf %0 : vector<32x128xf32> to vector<32x128xbf16>
    %c0_1 = arith.constant 0 : index
    %c0_2 = arith.constant 0 : index
    %2 = vector.load %arg3[%c0_1, %c0_2] : memref<128x128xbf16, #tpu.memory_space<vmem>>, vector<128x128xbf16>
    %cst = arith.constant dense<0.000000e+00> : vector<32x128xf32>
    %3 = tpu.matmul %1, %2, %cst {dimension_numbers = #tpu.dot_dimension_numbers<[1], [0], [0], [1], [0, 0, 1, 1], [], []>} : vector<32x128xbf16>, vector<128x128xbf16>, vector<32x128xf32> -> vector<32x128xf32>
    %c0_3 = arith.constant 0 : index
    %c0_4 = arith.constant 0 : index
    %4 = vector.load %arg5[%c0_3, %c0_4] : memref<128x1024xbf16, #tpu.memory_space<vmem>>, vector<128x256xbf16>
    %cst_5 = arith.constant dense<0.000000e+00> : vector<32x256xf32>
    %5 = tpu.matmul %1, %4, %cst_5 {dimension_numbers = #tpu.dot_dimension_numbers<[1], [0], [0], [1], [0, 0, 1, 1], [], []>} : vector<32x128xbf16>, vector<128x256xbf16>, vector<32x256xf32> -> vector<32x256xf32>
    %c0_6 = arith.constant 0 : index
    %c0_7 = arith.constant 0 : index
    %6 = vector.load %arg6[%c0_6, %c0_7] : memref<128x1024xbf16, #tpu.memory_space<vmem>>, vector<128x256xbf16>
    %cst_8 = arith.constant dense<0.000000e+00> : vector<32x256xf32>
    %7 = tpu.matmul %1, %6, %cst_8 {dimension_numbers = #tpu.dot_dimension_numbers<[1], [0], [0], [1], [0, 0, 1, 1], [], []>} : vector<32x128xbf16>, vector<128x256xbf16>, vector<32x256xf32> -> vector<32x256xf32>
    %8 = arith.mulf %5, %7 : vector<32x256xf32>
    %9 = arith.truncf %8 : vector<32x256xf32> to vector<32x256xbf16>
    %c0_9 = arith.constant 0 : index
    %c0_10 = arith.constant 0 : index
    %10 = vector.load %arg4[%c0_9, %c0_10] : memref<1024x128xbf16, #tpu.memory_space<vmem>>, vector<256x128xbf16>
    %cst_11 = arith.constant dense<0.000000e+00> : vector<32x128xf32>
    %11 = tpu.matmul %9, %10, %cst_11 {dimension_numbers = #tpu.dot_dimension_numbers<[1], [0], [0], [1], [0, 0, 1, 1], [], []>} : vector<32x256xbf16>, vector<256x128xbf16>, vector<32x128xf32> -> vector<32x128xf32>
    %12 = arith.addf %3, %11 : vector<32x128xf32>
    %c0_12 = arith.constant 0 : index
    %c256 = arith.constant 256 : index
    %13 = vector.load %arg5[%c0_12, %c256] : memref<128x1024xbf16, #tpu.memory_space<vmem>>, vector<128x256xbf16>
    %cst_13 = arith.constant dense<0.000000e+00> : vector<32x256xf32>
    %14 = tpu.matmul %1, %13, %cst_13 {dimension_numbers = #tpu.dot_dimension_numbers<[1], [0], [0], [1], [0, 0, 1, 1], [], []>} : vector<32x128xbf16>, vector<128x256xbf16>, vector<32x256xf32> -> vector<32x256xf32>
    %c0_14 = arith.constant 0 : index
    %c256_15 = arith.constant 256 : index
    %15 = vector.load %arg6[%c0_14, %c256_15] : memref<128x1024xbf16, #tpu.memory_space<vmem>>, vector<128x256xbf16>
    %cst_16 = arith.constant dense<0.000000e+00> : vector<32x256xf32>
    %16 = tpu.matmul %1, %15, %cst_16 {dimension_numbers = #tpu.dot_dimension_numbers<[1], [0], [0], [1], [0, 0, 1, 1], [], []>} : vector<32x128xbf16>, vector<128x256xbf16>, vector<32x256xf32> -> vector<32x256xf32>
    %17 = arith.mulf %14, %16 : vector<32x256xf32>
    %18 = arith.truncf %17 : vector<32x256xf32> to vector<32x256xbf16>
    %c256_17 = arith.constant 256 : index
    %c0_18 = arith.constant 0 : index
    %19 = vector.load %arg4[%c256_17, %c0_18] : memref<1024x128xbf16, #tpu.memory_space<vmem>>, vector<256x128xbf16>
    %cst_19 = arith.constant dense<0.000000e+00> : vector<32x128xf32>
    %20 = tpu.matmul %18, %19, %cst_19 {dimension_numbers = #tpu.dot_dimension_numbers<[1], [0], [0], [1], [0, 0, 1, 1], [], []>} : vector<32x256xbf16>, vector<256x128xbf16>, vector<32x128xf32> -> vector<32x128xf32>
    %21 = arith.addf %12, %20 : vector<32x128xf32>
    %c0_20 = arith.constant 0 : index
    %c512 = arith.constant 512 : index
    %22 = vector.load %arg5[%c0_20, %c512] : memref<128x1024xbf16, #tpu.memory_space<vmem>>, vector<128x256xbf16>
    %cst_21 = arith.constant dense<0.000000e+00> : vector<32x256xf32>
    %23 = tpu.matmul %1, %22, %cst_21 {dimension_numbers = #tpu.dot_dimension_numbers<[1], [0], [0], [1], [0, 0, 1, 1], [], []>} : vector<32x128xbf16>, vector<128x256xbf16>, vector<32x256xf32> -> vector<32x256xf32>
    %c0_22 = arith.constant 0 : index
    %c512_23 = arith.constant 512 : index
    %24 = vector.load %arg6[%c0_22, %c512_23] : memref<128x1024xbf16, #tpu.memory_space<vmem>>, vector<128x256xbf16>
    %cst_24 = arith.constant dense<0.000000e+00> : vector<32x256xf32>
    %25 = tpu.matmul %1, %24, %cst_24 {dimension_numbers = #tpu.dot_dimension_numbers<[1], [0], [0], [1], [0, 0, 1, 1], [], []>} : vector<32x128xbf16>, vector<128x256xbf16>, vector<32x256xf32> -> vector<32x256xf32>
    %26 = arith.mulf %23, %25 : vector<32x256xf32>
    %27 = arith.truncf %26 : vector<32x256xf32> to vector<32x256xbf16>
    %c512_25 = arith.constant 512 : index
    %c0_26 = arith.constant 0 : index
    %28 = vector.load %arg4[%c512_25, %c0_26] : memref<1024x128xbf16, #tpu.memory_space<vmem>>, vector<256x128xbf16>
    %cst_27 = arith.constant dense<0.000000e+00> : vector<32x128xf32>
    %29 = tpu.matmul %27, %28, %cst_27 {dimension_numbers = #tpu.dot_dimension_numbers<[1], [0], [0], [1], [0, 0, 1, 1], [], []>} : vector<32x256xbf16>, vector<256x128xbf16>, vector<32x128xf32> -> vector<32x128xf32>
    %30 = arith.addf %21, %29 : vector<32x128xf32>
    %c0_28 = arith.constant 0 : index
    %c768 = arith.constant 768 : index
    %31 = vector.load %arg5[%c0_28, %c768] : memref<128x1024xbf16, #tpu.memory_space<vmem>>, vector<128x256xbf16>
    %cst_29 = arith.constant dense<0.000000e+00> : vector<32x256xf32>
    %32 = tpu.matmul %1, %31, %cst_29 {dimension_numbers = #tpu.dot_dimension_numbers<[1], [0], [0], [1], [0, 0, 1, 1], [], []>} : vector<32x128xbf16>, vector<128x256xbf16>, vector<32x256xf32> -> vector<32x256xf32>
    %c0_30 = arith.constant 0 : index
    %c768_31 = arith.constant 768 : index
    %33 = vector.load %arg6[%c0_30, %c768_31] : memref<128x1024xbf16, #tpu.memory_space<vmem>>, vector<128x256xbf16>
    %cst_32 = arith.constant dense<0.000000e+00> : vector<32x256xf32>
    %34 = tpu.matmul %1, %33, %cst_32 {dimension_numbers = #tpu.dot_dimension_numbers<[1], [0], [0], [1], [0, 0, 1, 1], [], []>} : vector<32x128xbf16>, vector<128x256xbf16>, vector<32x256xf32> -> vector<32x256xf32>
    %35 = arith.mulf %32, %34 : vector<32x256xf32>
    %36 = arith.truncf %35 : vector<32x256xf32> to vector<32x256xbf16>
    %c768_33 = arith.constant 768 : index
    %c0_34 = arith.constant 0 : index
    %37 = vector.load %arg4[%c768_33, %c0_34] : memref<1024x128xbf16, #tpu.memory_space<vmem>>, vector<256x128xbf16>
    %cst_35 = arith.constant dense<0.000000e+00> : vector<32x128xf32>
    %38 = tpu.matmul %36, %37, %cst_35 {dimension_numbers = #tpu.dot_dimension_numbers<[1], [0], [0], [1], [0, 0, 1, 1], [], []>} : vector<32x256xbf16>, vector<256x128xbf16>, vector<32x128xf32> -> vector<32x128xf32>
    %39 = arith.addf %30, %38 : vector<32x128xf32>
    %40 = arith.negf %39 : vector<32x128xf32>
    %41 = math.exp %40 : vector<32x128xf32>
    %cst_36 = arith.constant 1.000000e+00 : f32
    %42 = vector.broadcast %cst_36 : f32 to vector<32x128xf32>
    %43 = arith.addf %42, %41 : vector<32x128xf32>
    %44 = arith.divf %42, %43 : vector<32x128xf32>
    %45 = arith.mulf %39, %44 : vector<32x128xf32>
    %c0_37 = arith.constant 0 : index
    %c0_38 = arith.constant 0 : index
    %46 = vector.load %arg2[%c0_37, %c0_38] : memref<32x4xf32, #tpu.memory_space<vmem>>, vector<32x4xf32>
    %c0_39 = arith.constant 0 : index
    %c0_40 = arith.constant 0 : index
    %47 = vector.load %arg7[%c0_39, %c0_40] : memref<4x128xf32, #tpu.memory_space<vmem>>, vector<4x128xf32>
    %cst_41 = arith.constant dense<0.000000e+00> : vector<32x128xf32>
    %48 = tpu.matmul %46, %47, %cst_41 {dimension_numbers = #tpu.dot_dimension_numbers<[1], [0], [0], [1], [0, 0, 1, 1], [], []>} : vector<32x4xf32>, vector<4x128xf32>, vector<32x128xf32> -> vector<32x128xf32>
    %c0_42 = arith.constant 0 : index
    %c0_43 = arith.constant 0 : index
    %49 = vector.load %arg8[%c0_42, %c0_43] : memref<1x128xf32, #tpu.memory_space<vmem>>, vector<1x128xf32>
    %50 = vector.broadcast %49 : vector<1x128xf32> to vector<32x128xf32>
    %51 = arith.addf %48, %50 : vector<32x128xf32>
    %52 = arith.mulf %45, %51 : vector<32x128xf32>
    %c0_44 = arith.constant 0 : index
    %c0_45 = arith.constant 0 : index
    %53 = vector.load %arg9[%c0_44, %c0_45] : memref<32x128xf32, #tpu.memory_space<vmem>>, vector<32x128xf32>
    tpu.vector_store %arg9[%c0_44, %c0_45], %52 {strides = array<i32>} : memref<32x128xf32, #tpu.memory_space<vmem>>, vector<32x128xf32>,
    return
  }
  func.func @transform_0(%arg0: i32) -> (i32, i32) {
    %c0_i32 = arith.constant 0 : i32
    %c0_i32_0 = arith.constant 0 : i32
    return %arg0, %c0_i32 : i32, i32
  }
  func.func @transform_1(%arg0: i32) -> (i32, i32) {
    %c0_i32 = arith.constant 0 : i32
    %c0_i32_0 = arith.constant 0 : i32
    return %arg0, %c0_i32 : i32, i32
  }
  func.func @transform_2(%arg0: i32) -> (i32, i32) {
    %c0_i32 = arith.constant 0 : i32
    %c0_i32_0 = arith.constant 0 : i32
    %c0_i32_1 = arith.constant 0 : i32
    return %c0_i32, %c0_i32_0 : i32, i32
  }
  func.func @transform_3(%arg0: i32) -> (i32, i32) {
    %c0_i32 = arith.constant 0 : i32
    %c0_i32_0 = arith.constant 0 : i32
    %c0_i32_1 = arith.constant 0 : i32
    return %c0_i32, %c0_i32_0 : i32, i32
  }
  func.func @transform_4(%arg0: i32) -> (i32, i32) {
    %c0_i32 = arith.constant 0 : i32
    %c0_i32_0 = arith.constant 0 : i32
    %c0_i32_1 = arith.constant 0 : i32
    return %c0_i32, %c0_i32_0 : i32, i32
  }
  func.func @transform_5(%arg0: i32) -> (i32, i32) {
    %c0_i32 = arith.constant 0 : i32
    %c0_i32_0 = arith.constant 0 : i32
    %c0_i32_1 = arith.constant 0 : i32
    return %c0_i32, %c0_i32_0 : i32, i32
  }
  func.func @transform_6(%arg0: i32) -> (i32, i32) {
    %c0_i32 = arith.constant 0 : i32
    %c0_i32_0 = arith.constant 0 : i32
    %c0_i32_1 = arith.constant 0 : i32
    return %c0_i32, %c0_i32_0 : i32, i32
  }
  func.func @transform_7(%arg0: i32) -> (i32, i32) {
    %c0_i32 = arith.constant 0 : i32
    %c0_i32_0 = arith.constant 0 : i32
    %c0_i32_1 = arith.constant 0 : i32
    return %c0_i32, %c0_i32_0 : i32, i32
  }
  func.func @transform_8(%arg0: i32) -> (i32, i32) {
    %c0_i32 = arith.constant 0 : i32
    %c0_i32_0 = arith.constant 0 : i32
    return %arg0, %c0_i32 : i32, i32
  }
}

</mosaic_0001>

<llo_original>
// kernel: tpu_custom_call.1
$region0: #{tpu_custom_call.1}
  #allocation0 [shape = 'u32[]', space=smem, size = 0x4, offset = 0x4, fixed_abs, tag = 'smem constant byte address 0x4 - core index']
  #allocation1 [shape = 'u32[144,128]{1,0:T(1,128)}', space=vmem, size = 0x12000, scoped, tag = 'internal scratch']
  %s0 = inlined_call_operand.vmem [shape: f32[64,128], index: 0, kind: input, shape index: {}]
  %s1 = inlined_call_operand.vmem [shape: f32[64,4], index: 1, kind: input, shape index: {}]
  %s2 = inlined_call_operand.hbm [shape: bf16[128,128], index: 2, kind: input, shape index: {}]
  %s3 = inlined_call_operand.hbm [shape: bf16[1024,128], index: 3, kind: input, shape index: {}]
  %s4 = inlined_call_operand.hbm [shape: bf16[128,1024], index: 4, kind: input, shape index: {}]
  %s5 = inlined_call_operand.hbm [shape: bf16[128,1024], index: 5, kind: input, shape index: {}]
  %s6 = inlined_call_operand.vmem [shape: f32[4,128], index: 6, kind: input, shape index: {}]
  %s7 = inlined_call_operand.vmem [shape: f32[1,128], index: 7, kind: input, shape index: {}]
  %s8 = inlined_call_operand.hbm [shape: f32[64,128], index: 8, kind: output, shape index: {}]
  %s9 = sld [smem:[#allocation0]]
  $region81: #{tpu_custom_call.1} parent=0
    _
  %s11 = ssub.s32 1, %s9
  %s12 = scalar_select 0, %s11, %s9
  $region1: #{tpu_custom_call.1} parent=0
    #allocation2 [shape = 'u8[32768]{0}', space=vmem, size = 0x8000, scoped, tag = 'input window, operand 2, single buffered']
    #allocation3 [shape = 's32[2]{0}', space=sflag, size = 0x8, scoped, tag = 'scoped memory for tpu_custom_call.1']
    #allocation4 [shape = 's32[2]{0}', space=sflag, size = 0x8, scoped, tag = 'scoped memory for tpu_custom_call.1']
    #allocation5 [shape = 'u8[262144]{0}', space=vmem, size = 0x40000, scoped, tag = 'input window, operand 3, single buffered']
    #allocation6 [shape = 's32[1]{0}', space=sflag, size = 0x4, scoped, tag = 'scoped memory for tpu_custom_call.1']
    #allocation7 [shape = 'u8[262144]{0}', space=vmem, size = 0x40000, scoped, tag = 'input window, operand 4, single buffered']
    #allocation8 [shape = 'u8[262144]{0}', space=vmem, size = 0x40000, scoped, tag = 'input window, operand 5, single buffered']
    #allocation9 [shape = 's32[1]{0}', space=sflag, size = 0x4, scoped, tag = 'scoped memory for tpu_custom_call.1']
    #allocation10 [shape = 'u8[32768]{0}', space=vmem, size = 0x8000, scoped, tag = 'output window, operand 0']
    %13 = vsyncpa [#allocation3], 0
    %14 = vsyncpa [#allocation6], 0
    %15 = vsyncpa [#allocation9], 0
    %16 = vsyncpa [#allocation4], 0
    %s17 = scalar_lea.sflag [#allocation4], 1
    %18 = vsyncpa %s17, 0
    loop: start=0, step=1, limit=4
    $region2: #{tpu_custom_call.1} parent=1 // loop_pre_header
      _
    $region3: #{tpu_custom_call.1} parent=1 // loop_header
      %s20 = sphi 0, %s24
      %p21 = scmp.ge.s32.totalorder %s20, 4
      %s30 = sphi 0, %s32
      %s33 = sphi 0, %s30
      %s34 = sphi 0, %s33
      %s50 = sphi 0, %s34
      %s56 = sphi 0, %s58
      %s59 = sphi 0, %s56
      %s60 = sphi 0, %s59
      %s76 = sphi 0, %s60
      %s80 = sphi 0, %s80
      %s82 = sphi 0, %s80
      %s83 = sphi 0, %s82
      %s97 = sphi 0, %s83
      %s101 = sphi 0, %s101
      %s103 = sphi 0, %s101
      %s104 = sphi 0, %s103
      %s118 = sphi 0, %s104
      %s122 = sphi 0, %s122
      %s124 = sphi 0, %s122
      %s125 = sphi 0, %s124
      %s139 = sphi 0, %s125
      %s143 = sphi 0, %s143
      %s145 = sphi 0, %s143
      %s146 = sphi 0, %s145
      %s160 = sphi 0, %s146
      %s164 = sphi 0, %s164
      %s166 = sphi 0, %s164
      %s167 = sphi 0, %s166
      %s181 = sphi 0, %s167
      %s185 = sphi 0, %s185
      %s187 = sphi 0, %s185
      %s188 = sphi 0, %s187
      %s202 = sphi 0, %s188
      %s208 = sphi 0, %s210
      %s211 = sphi 0, %s208
      %s212 = sphi 0, %s211
      %s228 = sphi 0, %s212
    $region4: #{tpu_custom_call.1} parent=1 // loop_header_branch
      %23 = sbr.rel (%p21) target = $region8
    $region5: #{tpu_custom_call.1} parent=1 // loop_body
      %s25 = ssub.s32 %s20, 1
      %s26 = ssub.s32 %s20, 2
      %s27 = sadd.s32 %s20, 1
      %s28 = ssub.s32 %s20, %s27
      %p29 = scmp.eq.s32.totalorder %s28, 0
      %s31 = sadd.s32 %s30, 1
      %s32 = scalar_select %p29, %s30, %s31
      %p35 = pneg %p29
      %p36 = scmp.eq.s32.totalorder %s20, 1
      %p37 = por %p35, %p36
      %p38 = scmp.ne.s32.totalorder %s30, %s33
      %p39 = scmp.eq.s32.totalorder %s20, 0
      %p40 = por %p38, %p39
      %p41 = scmp.ne.s32.totalorder %s30, %s33
      %p42 = scmp.eq.s32.totalorder %s25, 1
      %p43 = por %p41, %p42
      %p44 = scmp.ne.s32.totalorder %s33, %s34
      %p45 = scmp.eq.s32.totalorder %s25, 0
      %p46 = por %p44, %p45
      %p47 = scmp.ne.s32.totalorder %s33, %s34
      %p48 = scmp.eq.s32.totalorder %s26, 1
      %p49 = por %p47, %p48
      %p51 = scmp.ne.s32.totalorder %s34, %s50
      %p52 = scmp.eq.s32.totalorder %s26, 0
      %p53 = por %p51, %p52
      %s54 = ssub.s32 %s20, %s27
      %p55 = scmp.eq.s32.totalorder %s54, 0
      %s57 = sadd.s32 %s56, 1
      %s58 = scalar_select %p55, %s56, %s57
      %p61 = pneg %p55
      %p62 = scmp.eq.s32.totalorder %s20, 1
      %p63 = por %p61, %p62
      %p64 = scmp.ne.s32.totalorder %s56, %s59
      %p65 = scmp.eq.s32.totalorder %s20, 0
      %p66 = por %p64, %p65
      %p67 = scmp.ne.s32.totalorder %s56, %s59
      %p68 = scmp.eq.s32.totalorder %s25, 1
      %p69 = por %p67, %p68
      %p70 = scmp.ne.s32.totalorder %s59, %s60
      %p71 = scmp.eq.s32.totalorder %s25, 0
      %p72 = por %p70, %p71
      %p73 = scmp.ne.s32.totalorder %s59, %s60
      %p74 = scmp.eq.s32.totalorder %s26, 1
      %p75 = por %p73, %p74
      %p77 = scmp.ne.s32.totalorder %s60, %s76
      %p78 = scmp.eq.s32.totalorder %s26, 0
      %p79 = por %p77, %p78
      %s81 = sadd.s32 %s80, 1
      %p84 = scmp.eq.s32.totalorder %s20, 1
      %p85 = scmp.ne.s32.totalorder %s80, %s82
      %p86 = scmp.eq.s32.totalorder %s20, 0
      %p87 = por %p85, %p86
      %p88 = scmp.ne.s32.totalorder %s80, %s82
      %p89 = scmp.eq.s32.totalorder %s25, 1
      %p90 = por %p88, %p89
      %p91 = scmp.ne.s32.totalorder %s82, %s83
      %p92 = scmp.eq.s32.totalorder %s25, 0
      %p93 = por %p91, %p92
      %p94 = scmp.ne.s32.totalorder %s82, %s83
      %p95 = scmp.eq.s32.totalorder %s26, 1
      %p96 = por %p94, %p95
      %p98 = scmp.ne.s32.totalorder %s83, %s97
      %p99 = scmp.eq.s32.totalorder %s26, 0
      %p100 = por %p98, %p99
      %s102 = sadd.s32 %s101, 1
      %p105 = scmp.eq.s32.totalorder %s20, 1
      %p106 = scmp.ne.s32.totalorder %s101, %s103
      %p107 = scmp.eq.s32.totalorder %s20, 0
      %p108 = por %p106, %p107
      %p109 = scmp.ne.s32.totalorder %s101, %s103
      %p110 = scmp.eq.s32.totalorder %s25, 1
      %p111 = por %p109, %p110
      %p112 = scmp.ne.s32.totalorder %s103, %s104
      %p113 = scmp.eq.s32.totalorder %s25, 0
      %p114 = por %p112, %p113
      %p115 = scmp.ne.s32.totalorder %s103, %s104
      %p116 = scmp.eq.s32.totalorder %s26, 1
      %p117 = por %p115, %p116
      %p119 = scmp.ne.s32.totalorder %s104, %s118
      %p120 = scmp.eq.s32.totalorder %s26, 0
      %p121 = por %p119, %p120
      %s123 = sadd.s32 %s122, 1
      %p126 = scmp.eq.s32.totalorder %s20, 1
      %p127 = scmp.ne.s32.totalorder %s122, %s124
      %p128 = scmp.eq.s32.totalorder %s20, 0
      %p129 = por %p127, %p128
      %p130 = scmp.ne.s32.totalorder %s122, %s124
      %p131 = scmp.eq.s32.totalorder %s25, 1
      %p132 = por %p130, %p131
      %p133 = scmp.ne.s32.totalorder %s124, %s125
      %p134 = scmp.eq.s32.totalorder %s25, 0
      %p135 = por %p133, %p134
      %p136 = scmp.ne.s32.totalorder %s124, %s125
      %p137 = scmp.eq.s32.totalorder %s26, 1
      %p138 = por %p136, %p137
      %p140 = scmp.ne.s32.totalorder %s125, %s139
      %p141 = scmp.eq.s32.totalorder %s26, 0
      %p142 = por %p140, %p141
      %s144 = sadd.s32 %s143, 1
      %p147 = scmp.eq.s32.totalorder %s20, 1
      %p148 = scmp.ne.s32.totalorder %s143, %s145
      %p149 = scmp.eq.s32.totalorder %s20, 0
      %p150 = por %p148, %p149
      %p151 = scmp.ne.s32.totalorder %s143, %s145
      %p152 = scmp.eq.s32.totalorder %s25, 1
      %p153 = por %p151, %p152
      %p154 = scmp.ne.s32.totalorder %s145, %s146
      %p155 = scmp.eq.s32.totalorder %s25, 0
      %p156 = por %p154, %p155
      %p157 = scmp.ne.s32.totalorder %s145, %s146
      %p158 = scmp.eq.s32.totalorder %s26, 1
      %p159 = por %p157, %p158
      %p161 = scmp.ne.s32.totalorder %s146, %s160
      %p162 = scmp.eq.s32.totalorder %s26, 0
      %p163 = por %p161, %p162
      %s165 = sadd.s32 %s164, 1
      %p168 = scmp.eq.s32.totalorder %s20, 1
      %p169 = scmp.ne.s32.totalorder %s164, %s166
      %p170 = scmp.eq.s32.totalorder %s20, 0
      %p171 = por %p169, %p170
      %p172 = scmp.ne.s32.totalorder %s164, %s166
      %p173 = scmp.eq.s32.totalorder %s25, 1
      %p174 = por %p172, %p173
      %p175 = scmp.ne.s32.totalorder %s166, %s167
      %p176 = scmp.eq.s32.totalorder %s25, 0
      %p177 = por %p175, %p176
      %p178 = scmp.ne.s32.totalorder %s166, %s167
      %p179 = scmp.eq.s32.totalorder %s26, 1
      %p180 = por %p178, %p179
      %p182 = scmp.ne.s32.totalorder %s167, %s181
      %p183 = scmp.eq.s32.totalorder %s26, 0
      %p184 = por %p182, %p183
      %s186 = sadd.s32 %s185, 1
      %p189 = scmp.eq.s32.totalorder %s20, 1
      %p190 = scmp.ne.s32.totalorder %s185, %s187
      %p191 = scmp.eq.s32.totalorder %s20, 0
      %p192 = por %p190, %p191
      %p193 = scmp.ne.s32.totalorder %s185, %s187
      %p194 = scmp.eq.s32.totalorder %s25, 1
      %p195 = por %p193, %p194
      %p196 = scmp.ne.s32.totalorder %s187, %s188
      %p197 = scmp.eq.s32.totalorder %s25, 0
      %p198 = por %p196, %p197
      %p199 = scmp.ne.s32.totalorder %s187, %s188
      %p200 = scmp.eq.s32.totalorder %s26, 1
      %p201 = por %p199, %p200
      %p203 = scmp.ne.s32.totalorder %s188, %s202
      %p204 = scmp.eq.s32.totalorder %s26, 0
      %p205 = por %p203, %p204
      %s206 = ssub.s32 %s20, %s27
      %p207 = scmp.eq.s32.totalorder %s206, 0
      %s209 = sadd.s32 %s208, 1
      %s210 = scalar_select %p207, %s208, %s209
      %p213 = pneg %p207
      %p214 = scmp.eq.s32.totalorder %s20, 1
      %p215 = por %p213, %p214
      %p216 = scmp.ne.s32.totalorder %s208, %s211
      %p217 = scmp.eq.s32.totalorder %s20, 0
      %p218 = por %p216, %p217
      %p219 = scmp.ne.s32.totalorder %s208, %s211
      %p220 = scmp.eq.s32.totalorder %s25, 1
      %p221 = por %p219, %p220
      %p222 = scmp.ne.s32.totalorder %s211, %s212
      %p223 = scmp.eq.s32.totalorder %s25, 0
      %p224 = por %p222, %p223
      %p225 = scmp.ne.s32.totalorder %s211, %s212
      %p226 = scmp.eq.s32.totalorder %s26, 1
      %p227 = por %p225, %p226
      %p229 = scmp.ne.s32.totalorder %s212, %s228
      %p230 = scmp.eq.s32.totalorder %s26, 0
      %p231 = por %p229, %p230
      %p232 = scmp.le.s32.totalorder 1, %s20
      %p233 = scmp.lt.s32.totalorder %s20, 3
      %p234 = pnand %p232, %p233
      %p235 = pneg %p234
      // Predicated region
      $region9: #{tpu_custom_call.1} parent=5 // pred_check
        _
      $region10: #{tpu_custom_call.1} parent=5 // pred_check_branch
        %237 = sbr.rel (%p234) target = $region12
      $region11: #{tpu_custom_call.1} parent=5 // pred_region
        %s238 = ssub.s32 %s20, 1
        // Predicated region
        $region13: #{tpu_custom_call.1} parent=11 // pred_check
          %p239 = pneg %p93
        $region14: #{tpu_custom_call.1} parent=11 // pred_check_branch
          %241 = sbr.rel (%p239) target = $region16
        $region15: #{tpu_custom_call.1} parent=11 // pred_region
          %s243 = ssub.s32 1024, 1024
          %244 = vsyncadd [#allocation3], %s243
          %s245 = sshll.u32 [#allocation2], 4
          %s246 = int_to_ptr.vmem [resolvable:$true] %s245
          %251 = dma.hbm_to_vmem [thread:$0]  %s2, 1024, %s246, [#allocation3], 64, 64, 4
        $region16: #{tpu_custom_call.1} parent=11 // pred_fallthru
          _
        // Predicated region
        $region17: #{tpu_custom_call.1} parent=11 // pred_check
          %p252 = pneg %p114
        $region18: #{tpu_custom_call.1} parent=11 // pred_check_branch
          %254 = sbr.rel (%p252) target = $region20
        $region19: #{tpu_custom_call.1} parent=11 // pred_region
          %s256 = ssub.s32 8192, 8192
          %257 = vsyncadd [#allocation6], %s256
          %s258 = sshll.u32 [#allocation5], 4
          %s259 = int_to_ptr.vmem [resolvable:$true] %s258
          %264 = dma.hbm_to_vmem [thread:$0]  %s3, 8192, %s259, [#allocation6], 64, 64, 4
        $region20: #{tpu_custom_call.1} parent=11 // pred_fallthru
          _
        // Predicated region
        $region21: #{tpu_custom_call.1} parent=11 // pred_check
          %p265 = pneg %p135
        $region22: #{tpu_custom_call.1} parent=11 // pred_check_branch
          %267 = sbr.rel (%p265) target = $region24
        $region23: #{tpu_custom_call.1} parent=11 // pred_region
          %s269 = ssub.s32 8192, 8192
          %270 = vsyncadd [#allocation6], %s269
          %s271 = sshll.u32 [#allocation7], 4
          %s272 = int_to_ptr.vmem [resolvable:$true] %s271
          %277 = dma.hbm_to_vmem [thread:$0]  %s4, 8192, %s272, [#allocation6], 512, 512, 32
        $region24: #{tpu_custom_call.1} parent=11 // pred_fallthru
          _
        // Predicated region
        $region25: #{tpu_custom_call.1} parent=11 // pred_check
          %p278 = pneg %p156
        $region26: #{tpu_custom_call.1} parent=11 // pred_check_branch
          %280 = sbr.rel (%p278) target = $region28
        $region27: #{tpu_custom_call.1} parent=11 // pred_region
          %s282 = ssub.s32 8192, 8192
          %283 = vsyncadd [#allocation9], %s282
          %s284 = sshll.u32 [#allocation8], 4
          %s285 = int_to_ptr.vmem [resolvable:$true] %s284
          %290 = dma.hbm_to_vmem [thread:$0]  %s5, 8192, %s285, [#allocation9], 512, 512, 32
        $region28: #{tpu_custom_call.1} parent=11 // pred_fallthru
          _
        // Predicated region
        $region29: #{tpu_custom_call.1} parent=11 // pred_check
          %p291 = pneg %p177
        $region30: #{tpu_custom_call.1} parent=11 // pred_check_branch
          %293 = sbr.rel (%p291) target = $region32
        $region31: #{tpu_custom_call.1} parent=11 // pred_region
          _
        $region32: #{tpu_custom_call.1} parent=11 // pred_fallthru
          _
        // Predicated region
        $region33: #{tpu_custom_call.1} parent=11 // pred_check
          %p294 = pneg %p198
        $region34: #{tpu_custom_call.1} parent=11 // pred_check_branch
          %296 = sbr.rel (%p294) target = $region36
        $region35: #{tpu_custom_call.1} parent=11 // pred_region
          _
        $region36: #{tpu_custom_call.1} parent=11 // pred_fallthru
          _
      $region12: #{tpu_custom_call.1} parent=5 // pred_fallthru
        _
      %p297 = scmp.lt.s32.totalorder %s20, 2
      // Predicated region
      $region37: #{tpu_custom_call.1} parent=5 // pred_check
        %p298 = pneg %p297
      $region38: #{tpu_custom_call.1} parent=5 // pred_check_branch
        %300 = sbr.rel (%p298) target = $region40
      $region39: #{tpu_custom_call.1} parent=5 // pred_region
        // Predicated region
        $region41: #{tpu_custom_call.1} parent=39 // pred_check
          %p301 = pneg %p40
        $region42: #{tpu_custom_call.1} parent=39 // pred_check_branch
          %303 = sbr.rel (%p301) target = $region44
        $region43: #{tpu_custom_call.1} parent=39 // pred_region
          %s304 = smul.u32 4, %s20
          %p305 = scmp.lt.s32.totalorder %s304, 7
          %s306 = scalar_select %p305, %s304, 7
          %s307 = smul.addr %s306, 8
          %s308 = scalar_lea.vmem %s0, %s307
          %s309 = smul.u32 4, %s20
        $region44: #{tpu_custom_call.1} parent=39 // pred_fallthru
          _
        // Predicated region
        $region45: #{tpu_custom_call.1} parent=39 // pred_check
          %p310 = pneg %p66
        $region46: #{tpu_custom_call.1} parent=39 // pred_check_branch
          %312 = sbr.rel (%p310) target = $region48
        $region47: #{tpu_custom_call.1} parent=39 // pred_region
          %s313 = smul.u32 4, %s20
          %p314 = scmp.lt.s32.totalorder %s313, 7
          %s315 = scalar_select %p314, %s313, 7
          %s316 = smul.addr %s315, 8
          %s317 = scalar_lea.vmem %s1, %s316
          %s318 = smul.u32 4, %s20
        $region48: #{tpu_custom_call.1} parent=39 // pred_fallthru
          _
      $region40: #{tpu_custom_call.1} parent=5 // pred_fallthru
        _
      %p319 = scmp.le.s32.totalorder 1, %s20
      %p320 = scmp.lt.s32.totalorder %s20, 3
      %p321 = pnand %p319, %p320
      %p322 = pneg %p321
      // Predicated region
      $region49: #{tpu_custom_call.1} parent=5 // pred_check
        _
      $region50: #{tpu_custom_call.1} parent=5 // pred_check_branch
        %324 = sbr.rel (%p321) target = $region52
      $region51: #{tpu_custom_call.1} parent=5 // pred_region
        %s325 = ssub.s32 %s20, 1
        // Predicated region
        $region53: #{tpu_custom_call.1} parent=51 // pred_check
          %p326 = pneg %p93
        $region54: #{tpu_custom_call.1} parent=51 // pred_check_branch
          %328 = sbr.rel (%p326) target = $region56
        $region55: #{tpu_custom_call.1} parent=51 // pred_region
          %329 = dma.done [#allocation3], 1024
        $region56: #{tpu_custom_call.1} parent=51 // pred_fallthru
          _
        // Predicated region
        $region57: #{tpu_custom_call.1} parent=51 // pred_check
          %p330 = pneg %p114
        $region58: #{tpu_custom_call.1} parent=51 // pred_check_branch
          %332 = sbr.rel (%p330) target = $region60
        $region59: #{tpu_custom_call.1} parent=51 // pred_region
          %333 = dma.done [#allocation6], 8192
        $region60: #{tpu_custom_call.1} parent=51 // pred_fallthru
          _
        // Predicated region
        $region61: #{tpu_custom_call.1} parent=51 // pred_check
          %p334 = pneg %p135
        $region62: #{tpu_custom_call.1} parent=51 // pred_check_branch
          %336 = sbr.rel (%p334) target = $region64
        $region63: #{tpu_custom_call.1} parent=51 // pred_region
          %337 = dma.done [#allocation6], 8192
        $region64: #{tpu_custom_call.1} parent=51 // pred_fallthru
          _
        // Predicated region
        $region65: #{tpu_custom_call.1} parent=51 // pred_check
          %p338 = pneg %p156
        $region66: #{tpu_custom_call.1} parent=51 // pred_check_branch
          %340 = sbr.rel (%p338) target = $region68
        $region67: #{tpu_custom_call.1} parent=51 // pred_region
          %341 = dma.done [#allocation9], 8192
        $region68: #{tpu_custom_call.1} parent=51 // pred_fallthru
          _
        %s342 = smul.u32 4, %s25
        %p343 = scmp.lt.s32.totalorder %s342, 7
        %s344 = scalar_select %p343, %s342, 7
        %s345 = smul.addr %s344, 8
        %s346 = scalar_lea.vmem %s0, %s345
        %p347 = pneg %p46
        %p348 = pneg %p43
        %s349 = smul.u32 4, %s25
        %p350 = scmp.lt.s32.totalorder %s349, 7
        %s351 = scalar_select %p350, %s349, 7
        %s352 = smul.addr %s351, 8
        %s353 = scalar_lea.vmem %s1, %s352
        %p354 = pneg %p72
        %p355 = pneg %p69
        %p356 = pneg %p93
        %p357 = pneg %p90
        %p358 = pneg %p114
        %p359 = pneg %p111
        %p360 = pneg %p135
        %p361 = pneg %p132
        %p362 = pneg %p156
        %p363 = pneg %p153
        %p364 = pneg %p177
        %p365 = pneg %p174
        %p366 = pneg %p198
        %p367 = pneg %p195
        %p368 = pneg %p224
        %p369 = pneg %p221
        %s370 = sand.u32 %s211, 1
        %s371 = scalar_lea.sflag [#allocation4], %s370
        %s372 = sand.u32 %s211, 1
        %s373 = smul.addr %s372, 32
        %s374 = scalar_lea.vmem [#allocation10], %s373
        %s375 = smul.u32 4, %s25
        %p376 = scmp.lt.s32.totalorder %s375, 7
        %s377 = scalar_select %p376, %s375, 7
        %s378 = smul.addr %s377, 8
        %s379 = scalar_lea.vmem %s0, %s378
        %s380 = smul.u32 4, %s25
        %s381 = smul.u32 4, %s25
        %p382 = scmp.lt.s32.totalorder %s381, 7
        %s383 = scalar_select %p382, %s381, 7
        %s384 = smul.addr %s383, 8
        %s385 = scalar_lea.vmem %s1, %s384
        %s386 = smul.u32 4, %s25
        %s387 = smul.u32 4, %s25
        %v389 = vld [vmem:[%s379] sm:$0xff]
        %v390 = vld [vmem:[%s379 + $0x8] sm:$0xff]
        %v391 = vld [vmem:[%s379 + $0x10] sm:$0xff]
        %v392 = vld [vmem:[%s379 + $0x18] sm:$0xff]
        %v393 = vpack.c.bf16 %v390, %v389
        %v394 = vpack.c.bf16 %v392, %v391
        %v395 = vld [vmem:[#allocation2] sm:$0xf]
        %v396 = vld [vmem:[#allocation2 + $0x4] sm:$0xf]
        %v397 = vld [vmem:[#allocation2 + $0x8] sm:$0xf]
        %v398 = vld [vmem:[#allocation2 + $0xc] sm:$0xf]
        %v399 = vld [vmem:[#allocation2 + $0x10] sm:$0xf]
        %v400 = vld [vmem:[#allocation2 + $0x14] sm:$0xf]
        %v401 = vld [vmem:[#allocation2 + $0x18] sm:$0xf]
        %v402 = vld [vmem:[#allocation2 + $0x1c] sm:$0xf]
        %v403 = vld [vmem:[#allocation2 + $0x20] sm:$0xf]
        %v404 = vld [vmem:[#allocation2 + $0x24] sm:$0xf]
        %v405 = vld [vmem:[#allocation2 + $0x28] sm:$0xf]
        %v406 = vld [vmem:[#allocation2 + $0x2c] sm:$0xf]
        %v407 = vld [vmem:[#allocation2 + $0x30] sm:$0xf]
        %v408 = vld [vmem:[#allocation2 + $0x34] sm:$0xf]
        %v409 = vld [vmem:[#allocation2 + $0x38] sm:$0xf]
        %v410 = vld [vmem:[#allocation2 + $0x3c] sm:$0xf]
        %v411 = vld [vmem:[#allocation7] sm:$0xff]
        %v412 = vld [vmem:[#allocation7 + $0x20] sm:$0xff]
        %v413 = vld [vmem:[#allocation7 + $0x40] sm:$0xff]
        %v414 = vld [vmem:[#allocation7 + $0x60] sm:$0xff]
        %v415 = vld [vmem:[#allocation7 + $0x80] sm:$0xff]
        %v416 = vld [vmem:[#allocation7 + $0xa0] sm:$0xff]
        %v417 = vld [vmem:[#allocation7 + $0xc0] sm:$0xff]
        %v418 = vld [vmem:[#allocation7 + $0xe0] sm:$0xff]
        %v419 = vld [vmem:[#allocation7 + $0x100] sm:$0xff]
        %v420 = vld [vmem:[#allocation7 + $0x120] sm:$0xff]
        %v421 = vld [vmem:[#allocation7 + $0x140] sm:$0xff]
        %v422 = vld [vmem:[#allocation7 + $0x160] sm:$0xff]
        %v423 = vld [vmem:[#allocation7 + $0x180] sm:$0xff]
        %v424 = vld [vmem:[#allocation7 + $0x1a0] sm:$0xff]
        %v425 = vld [vmem:[#allocation7 + $0x1c0] sm:$0xff]
        %v426 = vld [vmem:[#allocation7 + $0x1e0] sm:$0xff]
        %v443 = vunpack.c.l.b16 %v411
        %v444 = vunpack.c.h.b16 %v411
        %v445 = vunpack.c.l.b16 %v412
        %v446 = vunpack.c.h.b16 %v412
        %v447 = vunpack.c.l.b16 %v413
        %v448 = vunpack.c.h.b16 %v413
        %v449 = vunpack.c.l.b16 %v414
        %v450 = vunpack.c.h.b16 %v414
        %v451 = vunpack.c.l.b16 %v415
        %v452 = vunpack.c.h.b16 %v415
        %v453 = vunpack.c.l.b16 %v416
        %v454 = vunpack.c.h.b16 %v416
        %v455 = vunpack.c.l.b16 %v417
        %v456 = vunpack.c.h.b16 %v417
        %v457 = vunpack.c.l.b16 %v418
        %v458 = vunpack.c.h.b16 %v418
        %v459 = vunpack.c.l.b16 %v419
        %v460 = vunpack.c.h.b16 %v419
        %v461 = vunpack.c.l.b16 %v420
        %v462 = vunpack.c.h.b16 %v420
        %v463 = vunpack.c.l.b16 %v421
        %v464 = vunpack.c.h.b16 %v421
        %v465 = vunpack.c.l.b16 %v422
        %v466 = vunpack.c.h.b16 %v422
        %v467 = vunpack.c.l.b16 %v423
        %v468 = vunpack.c.h.b16 %v423
        %v469 = vunpack.c.l.b16 %v424
        %v470 = vunpack.c.h.b16 %v424
        %v471 = vunpack.c.l.b16 %v425
        %v472 = vunpack.c.h.b16 %v425
        %v473 = vunpack.c.l.b16 %v426
        %v474 = vunpack.c.h.b16 %v426
        %v475 = vpack.c.b16 %v445, %v443
        %v476 = vpack.c.b16 %v446, %v444
        %v477 = vpack.c.b16 %v449, %v447
        %v478 = vpack.c.b16 %v450, %v448
        %v479 = vpack.c.b16 %v453, %v451
        %v480 = vpack.c.b16 %v454, %v452
        %v481 = vpack.c.b16 %v457, %v455
        %v482 = vpack.c.b16 %v458, %v456
        %v483 = vpack.c.b16 %v461, %v459
        %v484 = vpack.c.b16 %v462, %v460
        %v485 = vpack.c.b16 %v465, %v463
        %v486 = vpack.c.b16 %v466, %v464
        %v487 = vpack.c.b16 %v469, %v467
        %v488 = vpack.c.b16 %v470, %v468
        %v489 = vpack.c.b16 %v473, %v471
        %v490 = vpack.c.b16 %v474, %v472
        %507 = vmatprep.subr.bf16.mxu0 %v490
        %508 = vmatpush1.bf16.msra.mxu0 %v489
        %509 = vmatprep.subr.bf16.mxu0 %v488
        %510 = vmatpush1.bf16.msra.mxu0 %v487
        %511 = vmatprep.subr.bf16.mxu0 %v486
        %512 = vmatpush1.bf16.msra.mxu0 %v485
        %513 = vmatprep.subr.bf16.mxu0 %v484
        %514 = vmatpush1.bf16.msra.mxu0 %v483
        %515 = vmatprep.subr.bf16.mxu0 %v482
        %516 = vmatpush1.bf16.msra.mxu0 %v481
        %517 = vmatprep.subr.bf16.mxu0 %v480
        %518 = vmatpush1.bf16.msra.mxu0 %v479
        %519 = vmatprep.subr.bf16.mxu0 %v478
        %520 = vmatpush1.bf16.msra.mxu0 %v477
        %521 = vmatprep.subr.bf16.mxu0 %v476
        %522 = vmatpush1.bf16.msra.mxu0 %v475
        %523 = vmatprep.subr.bf16.mxu0 0
        %524 = vmatpush2.bf16.msra.mxu0 0
        %525 = vmatprep.subr.bf16.mxu0 0
        %526 = vmatpush2.bf16.msra.mxu0 0
        %527 = vmatprep.subr.bf16.mxu0 0
        %528 = vmatpush2.bf16.msra.mxu0 0
        %529 = vmatprep.subr.bf16.mxu0 0
        %530 = vmatpush2.bf16.msra.mxu0 0
        %531 = vmatprep.subr.bf16.mxu0 0
        %532 = vmatpush2.bf16.msra.mxu0 0
        %533 = vmatprep.subr.bf16.mxu0 0
        %534 = vmatpush2.bf16.msra.mxu0 0
        %535 = vmatprep.subr.bf16.mxu0 0
        %536 = vmatpush2.bf16.msra.mxu0 0
        %537 = vmatprep.subr.bf16.mxu0 0
        %538 = vmatpush2.bf16.msra.mxu0 0
        %539 = vmatprep.mubr.bf16.mxu0 0
        %540 = vmatmul.mubr.bf16.gmra.mxu0 %v393
        %v541 = vpop.f32.mrf.mxu0
        %v542 = vadd.f32 0.0, %v541
        %v543 = vpop.f32.mrf.mxu0
        %v544 = vadd.f32 0.0, %v543
        %v545 = vpop.f32.mrf.mxu0
        %v546 = vadd.f32 0.0, %v545
        %v547 = vpop.f32.mrf.mxu0
        %v548 = vadd.f32 0.0, %v547
        %549 = vmatprep.mubr.bf16.mxu0 0
        %550 = vmatmul.mubr.bf16.gmra.mxu0 %v394
        %v551 = vpop.f32.mrf.mxu0
        %v552 = vadd.f32 0.0, %v551
        %v553 = vpop.f32.mrf.mxu0
        %v554 = vadd.f32 0.0, %v553
        %v555 = vpop.f32.mrf.mxu0
        %v556 = vadd.f32 0.0, %v555
        %v557 = vpop.f32.mrf.mxu0
        %v558 = vadd.f32 0.0, %v557
        %559 = vdwg.mxu0
        %v560 = vld [vmem:[#allocation8] sm:$0xff]
        %v561 = vld [vmem:[#allocation8 + $0x20] sm:$0xff]
        %v562 = vld [vmem:[#allocation8 + $0x40] sm:$0xff]
        %v563 = vld [vmem:[#allocation8 + $0x60] sm:$0xff]
        %v564 = vld [vmem:[#allocation8 + $0x80] sm:$0xff]
        %v565 = vld [vmem:[#allocation8 + $0xa0] sm:$0xff]
        %v566 = vld [vmem:[#allocation8 + $0xc0] sm:$0xff]
        %v567 = vld [vmem:[#allocation8 + $0xe0] sm:$0xff]
        %v568 = vld [vmem:[#allocation8 + $0x100] sm:$0xff]
        %v569 = vld [vmem:[#allocation8 + $0x120] sm:$0xff]
        %v570 = vld [vmem:[#allocation8 + $0x140] sm:$0xff]
        %v571 = vld [vmem:[#allocation8 + $0x160] sm:$0xff]
        %v572 = vld [vmem:[#allocation8 + $0x180] sm:$0xff]
        %v573 = vld [vmem:[#allocation8 + $0x1a0] sm:$0xff]
        %v574 = vld [vmem:[#allocation8 + $0x1c0] sm:$0xff]
        %v575 = vld [vmem:[#allocation8 + $0x1e0] sm:$0xff]
        %v592 = vunpack.c.l.b16 %v560
        %v593 = vunpack.c.h.b16 %v560
        %v594 = vunpack.c.l.b16 %v561
        %v595 = vunpack.c.h.b16 %v561
        %v596 = vunpack.c.l.b16 %v562
        %v597 = vunpack.c.h.b16 %v562
        %v598 = vunpack.c.l.b16 %v563
        %v599 = vunpack.c.h.b16 %v563
        %v600 = vunpack.c.l.b16 %v564
        %v601 = vunpack.c.h.b16 %v564
        %v602 = vunpack.c.l.b16 %v565
        %v603 = vunpack.c.h.b16 %v565
        %v604 = vunpack.c.l.b16 %v566
        %v605 = vunpack.c.h.b16 %v566
        %v606 = vunpack.c.l.b16 %v567
        %v607 = vunpack.c.h.b16 %v567
        %v608 = vunpack.c.l.b16 %v568
        %v609 = vunpack.c.h.b16 %v568
        %v610 = vunpack.c.l.b16 %v569
        %v611 = vunpack.c.h.b16 %v569
        %v612 = vunpack.c.l.b16 %v570
        %v613 = vunpack.c.h.b16 %v570
        %v614 = vunpack.c.l.b16 %v571
        %v615 = vunpack.c.h.b16 %v571
        %v616 = vunpack.c.l.b16 %v572
        %v617 = vunpack.c.h.b16 %v572
        %v618 = vunpack.c.l.b16 %v573
        %v619 = vunpack.c.h.b16 %v573
        %v620 = vunpack.c.l.b16 %v574
        %v621 = vunpack.c.h.b16 %v574
        %v622 = vunpack.c.l.b16 %v575
        %v623 = vunpack.c.h.b16 %v575
        %v624 = vpack.c.b16 %v594, %v592
        %v625 = vpack.c.b16 %v595, %v593
        %v626 = vpack.c.b16 %v598, %v596
        %v627 = vpack.c.b16 %v599, %v597
        %v628 = vpack.c.b16 %v602, %v600
        %v629 = vpack.c.b16 %v603, %v601
        %v630 = vpack.c.b16 %v606, %v604
        %v631 = vpack.c.b16 %v607, %v605
        %v632 = vpack.c.b16 %v610, %v608
        %v633 = vpack.c.b16 %v611, %v609
        %v634 = vpack.c.b16 %v614, %v612
        %v635 = vpack.c.b16 %v615, %v613
        %v636 = vpack.c.b16 %v618, %v616
        %v637 = vpack.c.b16 %v619, %v617
        %v638 = vpack.c.b16 %v622, %v620
        %v639 = vpack.c.b16 %v623, %v621
        %656 = vmatprep.subr.bf16.mxu0 %v639
        %657 = vmatpush1.bf16.msra.mxu0 %v638
        %658 = vmatprep.subr.bf16.mxu0 %v637
        %659 = vmatpush1.bf16.msra.mxu0 %v636
        %660 = vmatprep.subr.bf16.mxu0 %v635
        %661 = vmatpush1.bf16.msra.mxu0 %v634
        %662 = vmatprep.subr.bf16.mxu0 %v633
        %663 = vmatpush1.bf16.msra.mxu0 %v632
        %664 = vmatprep.subr.bf16.mxu0 %v631
        %665 = vmatpush1.bf16.msra.mxu0 %v630
        %666 = vmatprep.subr.bf16.mxu0 %v629
        %667 = vmatpush1.bf16.msra.mxu0 %v628
        %668 = vmatprep.subr.bf16.mxu0 %v627
        %669 = vmatpush1.bf16.msra.mxu0 %v626
        %670 = vmatprep.subr.bf16.mxu0 %v625
        %671 = vmatpush1.bf16.msra.mxu0 %v624
        %672 = vmatprep.subr.bf16.mxu0 0
        %673 = vmatpush2.bf16.msra.mxu0 0
        %674 = vmatprep.subr.bf16.mxu0 0
        %675 = vmatpush2.bf16.msra.mxu0 0
        %676 = vmatprep.subr.bf16.mxu0 0
        %677 = vmatpush2.bf16.msra.mxu0 0
        %678 = vmatprep.subr.bf16.mxu0 0
        %679 = vmatpush2.bf16.msra.mxu0 0
        %680 = vmatprep.subr.bf16.mxu0 0
        %681 = vmatpush2.bf16.msra.mxu0 0
        %682 = vmatprep.subr.bf16.mxu0 0
        %683 = vmatpush2.bf16.msra.mxu0 0
        %684 = vmatprep.subr.bf16.mxu0 0
        %685 = vmatpush2.bf16.msra.mxu0 0
        %686 = vmatprep.subr.bf16.mxu0 0
        %687 = vmatpush2.bf16.msra.mxu0 0
        %688 = vmatprep.mubr.bf16.mxu0 0
        %689 = vmatmul.mubr.bf16.gmra.mxu0 %v393
        %v690 = vpop.f32.mrf.mxu0
        %v691 = vadd.f32 0.0, %v690
        %v692 = vpop.f32.mrf.mxu0
        %v693 = vadd.f32 0.0, %v692
        %v694 = vpop.f32.mrf.mxu0
        %v695 = vadd.f32 0.0, %v694
        %v696 = vpop.f32.mrf.mxu0
        %v697 = vadd.f32 0.0, %v696
        %698 = vmatprep.mubr.bf16.mxu0 0
        %699 = vmatmul.mubr.bf16.gmra.mxu0 %v394
        %v700 = vpop.f32.mrf.mxu0
        %v701 = vadd.f32 0.0, %v700
        %v702 = vpop.f32.mrf.mxu0
        %v703 = vadd.f32 0.0, %v702
        %v704 = vpop.f32.mrf.mxu0
        %v705 = vadd.f32 0.0, %v704
        %v706 = vpop.f32.mrf.mxu0
        %v707 = vadd.f32 0.0, %v706
        %708 = vdwg.mxu0
        %v709 = vmul.f32 %v542, %v691
        %v710 = vmul.f32 %v544, %v693
        %v711 = vmul.f32 %v546, %v695
        %v712 = vmul.f32 %v548, %v697
        %v713 = vmul.f32 %v552, %v701
        %v714 = vmul.f32 %v554, %v703
        %v715 = vmul.f32 %v556, %v705
        %v716 = vmul.f32 %v558, %v707
        %v717 = vpack.c.bf16 %v711, %v709
        %v718 = vpack.c.bf16 %v712, %v710
        %v719 = vpack.c.bf16 %v715, %v713
        %v720 = vpack.c.bf16 %v716, %v714
        %v721 = vld [vmem:[#allocation5] sm:$0xf]
        %v722 = vld [vmem:[#allocation5 + $0x4] sm:$0xf]
        %v723 = vld [vmem:[#allocation5 + $0x8] sm:$0xf]
        %v724 = vld [vmem:[#allocation5 + $0xc] sm:$0xf]
        %v725 = vld [vmem:[#allocation5 + $0x10] sm:$0xf]
        %v726 = vld [vmem:[#allocation5 + $0x14] sm:$0xf]
        %v727 = vld [vmem:[#allocation5 + $0x18] sm:$0xf]
        %v728 = vld [vmem:[#allocation5 + $0x1c] sm:$0xf]
        %v729 = vld [vmem:[#allocation5 + $0x20] sm:$0xf]
        %v730 = vld [vmem:[#allocation5 + $0x24] sm:$0xf]
        %v731 = vld [vmem:[#allocation5 + $0x28] sm:$0xf]
        %v732 = vld [vmem:[#allocation5 + $0x2c] sm:$0xf]
        %v733 = vld [vmem:[#allocation5 + $0x30] sm:$0xf]
        %v734 = vld [vmem:[#allocation5 + $0x34] sm:$0xf]
        %v735 = vld [vmem:[#allocation5 + $0x38] sm:$0xf]
        %v736 = vld [vmem:[#allocation5 + $0x3c] sm:$0xf]
        %v737 = vld [vmem:[#allocation5 + $0x40] sm:$0xf]
        %v738 = vld [vmem:[#allocation5 + $0x44] sm:$0xf]
        %v739 = vld [vmem:[#allocation5 + $0x48] sm:$0xf]
        %v740 = vld [vmem:[#allocation5 + $0x4c] sm:$0xf]
        %v741 = vld [vmem:[#allocation5 + $0x50] sm:$0xf]
        %v742 = vld [vmem:[#allocation5 + $0x54] sm:$0xf]
        %v743 = vld [vmem:[#allocation5 + $0x58] sm:$0xf]
        %v744 = vld [vmem:[#allocation5 + $0x5c] sm:$0xf]
        %v745 = vld [vmem:[#allocation5 + $0x60] sm:$0xf]
        %v746 = vld [vmem:[#allocation5 + $0x64] sm:$0xf]
        %v747 = vld [vmem:[#allocation5 + $0x68] sm:$0xf]
        %v748 = vld [vmem:[#allocation5 + $0x6c] sm:$0xf]
        %v749 = vld [vmem:[#allocation5 + $0x70] sm:$0xf]
        %v750 = vld [vmem:[#allocation5 + $0x74] sm:$0xf]
        %v751 = vld [vmem:[#allocation5 + $0x78] sm:$0xf]
        %v752 = vld [vmem:[#allocation5 + $0x7c] sm:$0xf]
        %v785 = vunpack.c.l.b16 %v721
        %v786 = vunpack.c.l.b16 %v722
        %v787 = vunpack.c.l.b16 %v723
        %v788 = vunpack.c.l.b16 %v724
        %v789 = vunpack.c.l.b16 %v725
        %v790 = vunpack.c.l.b16 %v726
        %v791 = vunpack.c.l.b16 %v727
        %v792 = vunpack.c.l.b16 %v728
        %v793 = vunpack.c.l.b16 %v729
        %v794 = vunpack.c.l.b16 %v730
        %v795 = vunpack.c.l.b16 %v731
        %v796 = vunpack.c.l.b16 %v732
        %v797 = vunpack.c.l.b16 %v733
        %v798 = vunpack.c.l.b16 %v734
        %v799 = vunpack.c.l.b16 %v735
        %v800 = vunpack.c.l.b16 %v736
        %v801 = vunpack.c.l.b16 %v737
        %v802 = vunpack.c.l.b16 %v738
        %v803 = vunpack.c.l.b16 %v739
        %v804 = vunpack.c.l.b16 %v740
        %v805 = vunpack.c.l.b16 %v741
        %v806 = vunpack.c.l.b16 %v742
        %v807 = vunpack.c.l.b16 %v743
        %v808 = vunpack.c.l.b16 %v744
        %v809 = vunpack.c.l.b16 %v745
        %v810 = vunpack.c.l.b16 %v746
        %v811 = vunpack.c.l.b16 %v747
        %v812 = vunpack.c.l.b16 %v748
        %v813 = vunpack.c.l.b16 %v749
        %v814 = vunpack.c.l.b16 %v750
        %v815 = vunpack.c.l.b16 %v751
        %v816 = vunpack.c.l.b16 %v752
        %v817 = vpack.c.b16 %v786, %v785
        %v818 = vpack.c.b16 %v788, %v787
        %v819 = vpack.c.b16 %v790, %v789
        %v820 = vpack.c.b16 %v792, %v791
        %v821 = vpack.c.b16 %v794, %v793
        %v822 = vpack.c.b16 %v796, %v795
        %v823 = vpack.c.b16 %v798, %v797
        %v824 = vpack.c.b16 %v800, %v799
        %v825 = vpack.c.b16 %v802, %v801
        %v826 = vpack.c.b16 %v804, %v803
        %v827 = vpack.c.b16 %v806, %v805
        %v828 = vpack.c.b16 %v808, %v807
        %v829 = vpack.c.b16 %v810, %v809
        %v830 = vpack.c.b16 %v812, %v811
        %v831 = vpack.c.b16 %v814, %v813
        %v832 = vpack.c.b16 %v816, %v815
        %849 = vmatprep.subr.bf16.mxu0 0
        %850 = vmatpush1.bf16.msra.mxu0 %v824
        %851 = vmatprep.subr.bf16.mxu0 0
        %852 = vmatpush1.bf16.msra.mxu0 %v823
        %853 = vmatprep.subr.bf16.mxu0 0
        %854 = vmatpush1.bf16.msra.mxu0 %v822
        %855 = vmatprep.subr.bf16.mxu0 0
        %856 = vmatpush1.bf16.msra.mxu0 %v821
        %857 = vmatprep.subr.bf16.mxu0 0
        %858 = vmatpush1.bf16.msra.mxu0 %v820
        %859 = vmatprep.subr.bf16.mxu0 0
        %860 = vmatpush1.bf16.msra.mxu0 %v819
        %861 = vmatprep.subr.bf16.mxu0 0
        %862 = vmatpush1.bf16.msra.mxu0 %v818
        %863 = vmatprep.subr.bf16.mxu0 0
        %864 = vmatpush1.bf16.msra.mxu0 %v817
        %865 = vmatprep.subr.bf16.mxu0 0
        %866 = vmatpush2.bf16.msra.mxu0 %v832
        %867 = vmatprep.subr.bf16.mxu0 0
        %868 = vmatpush2.bf16.msra.mxu0 %v831
        %869 = vmatprep.subr.bf16.mxu0 0
        %870 = vmatpush2.bf16.msra.mxu0 %v830
        %871 = vmatprep.subr.bf16.mxu0 0
        %872 = vmatpush2.bf16.msra.mxu0 %v829
        %873 = vmatprep.subr.bf16.mxu0 0
        %874 = vmatpush2.bf16.msra.mxu0 %v828
        %875 = vmatprep.subr.bf16.mxu0 0
        %876 = vmatpush2.bf16.msra.mxu0 %v827
        %877 = vmatprep.subr.bf16.mxu0 0
        %878 = vmatpush2.bf16.msra.mxu0 %v826
        %879 = vmatprep.subr.bf16.mxu0 0
        %880 = vmatpush2.bf16.msra.mxu0 %v825
        %881 = vmatprep.mubr.bf16.mxu0 %v718
        %882 = vmatmul.mubr.bf16.gmra.mxu0 %v717
        %v883 = vpop.f32.mrf.mxu0
        %v884 = vadd.f32 0.0, %v883
        %v885 = vpop.f32.mrf.mxu0
        %v886 = vpop.f32.mrf.mxu0
        %v887 = vadd.f32 0.0, %v886
        %v888 = vpop.f32.mrf.mxu0
        %889 = vmatprep.mubr.bf16.mxu0 %v720
        %890 = vmatmul.mubr.bf16.gmra.mxu0 %v719
        %v891 = vpop.f32.mrf.mxu0
        %v892 = vadd.f32 0.0, %v891
        %v893 = vpop.f32.mrf.mxu0
        %v894 = vpop.f32.mrf.mxu0
        %v895 = vadd.f32 0.0, %v894
        %v896 = vpop.f32.mrf.mxu0
        %897 = vdwg.mxu0
        %v914 = vunpack.c.l.b16 %v395
        %v915 = vunpack.c.l.b16 %v396
        %v916 = vunpack.c.l.b16 %v397
        %v917 = vunpack.c.l.b16 %v398
        %v918 = vunpack.c.l.b16 %v399
        %v919 = vunpack.c.l.b16 %v400
        %v920 = vunpack.c.l.b16 %v401
        %v921 = vunpack.c.l.b16 %v402
        %v922 = vunpack.c.l.b16 %v403
        %v923 = vunpack.c.l.b16 %v404
        %v924 = vunpack.c.l.b16 %v405
        %v925 = vunpack.c.l.b16 %v406
        %v926 = vunpack.c.l.b16 %v407
        %v927 = vunpack.c.l.b16 %v408
        %v928 = vunpack.c.l.b16 %v409
        %v929 = vunpack.c.l.b16 %v410
        %v930 = vpack.c.b16 %v915, %v914
        %v931 = vpack.c.b16 %v917, %v916
        %v932 = vpack.c.b16 %v919, %v918
        %v933 = vpack.c.b16 %v921, %v920
        %v934 = vpack.c.b16 %v923, %v922
        %v935 = vpack.c.b16 %v925, %v924
        %v936 = vpack.c.b16 %v927, %v926
        %v937 = vpack.c.b16 %v929, %v928
        %946 = vmatprep.subr.bf16.mxu0 0
        %947 = vmatpush1.bf16.msra.mxu0 %v937
        %948 = vmatprep.subr.bf16.mxu0 0
        %949 = vmatpush1.bf16.msra.mxu0 %v936
        %950 = vmatprep.subr.bf16.mxu0 0
        %951 = vmatpush1.bf16.msra.mxu0 %v935
        %952 = vmatprep.subr.bf16.mxu0 0
        %953 = vmatpush1.bf16.msra.mxu0 %v934
        %954 = vmatprep.subr.bf16.mxu0 0
        %955 = vmatpush1.bf16.msra.mxu0 %v933
        %956 = vmatprep.subr.bf16.mxu0 0
        %957 = vmatpush1.bf16.msra.mxu0 %v932
        %958 = vmatprep.subr.bf16.mxu0 0
        %959 = vmatpush1.bf16.msra.mxu0 %v931
        %960 = vmatprep.subr.bf16.mxu0 0
        %961 = vmatpush1.bf16.msra.mxu0 %v930
        %962 = vmatprep.subr.bf16.mxu0 0
        %963 = vmatpush2.bf16.msra.mxu0 0
        %964 = vmatprep.subr.bf16.mxu0 0
        %965 = vmatpush2.bf16.msra.mxu0 0
        %966 = vmatprep.subr.bf16.mxu0 0
        %967 = vmatpush2.bf16.msra.mxu0 0
        %968 = vmatprep.subr.bf16.mxu0 0
        %969 = vmatpush2.bf16.msra.mxu0 0
        %970 = vmatprep.subr.bf16.mxu0 0
        %971 = vmatpush2.bf16.msra.mxu0 0
        %972 = vmatprep.subr.bf16.mxu0 0
        %973 = vmatpush2.bf16.msra.mxu0 0
        %974 = vmatprep.subr.bf16.mxu0 0
        %975 = vmatpush2.bf16.msra.mxu0 0
        %976 = vmatprep.subr.bf16.mxu0 0
        %977 = vmatpush2.bf16.msra.mxu0 0
        %978 = vmatprep.mubr.bf16.mxu0 0
        %979 = vmatmul.mubr.bf16.gmra.mxu0 %v393
        %v980 = vpop.f32.mrf.mxu0
        %v981 = vadd.f32 %v884, %v980
        %v982 = vpop.f32.mrf.mxu0
        %v983 = vpop.f32.mrf.mxu0
        %v984 = vadd.f32 %v887, %v983
        %v985 = vpop.f32.mrf.mxu0
        %986 = vmatprep.mubr.bf16.mxu0 0
        %987 = vmatmul.mubr.bf16.gmra.mxu0 %v394
        %v988 = vpop.f32.mrf.mxu0
        %v989 = vadd.f32 %v892, %v988
        %v990 = vpop.f32.mrf.mxu0
        %v991 = vpop.f32.mrf.mxu0
        %v992 = vadd.f32 %v895, %v991
        %v993 = vpop.f32.mrf.mxu0
        %994 = vdwg.mxu0
        %v995 = vld [vmem:[#allocation7 + $0x8] sm:$0xff]
        %v996 = vld [vmem:[#allocation7 + $0x28] sm:$0xff]
        %v997 = vld [vmem:[#allocation7 + $0x48] sm:$0xff]
        %v998 = vld [vmem:[#allocation7 + $0x68] sm:$0xff]
        %v999 = vld [vmem:[#allocation7 + $0x88] sm:$0xff]
        %v1000 = vld [vmem:[#allocation7 + $0xa8] sm:$0xff]
        %v1001 = vld [vmem:[#allocation7 + $0xc8] sm:$0xff]
        %v1002 = vld [vmem:[#allocation7 + $0xe8] sm:$0xff]
        %v1003 = vld [vmem:[#allocation7 + $0x108] sm:$0xff]
        %v1004 = vld [vmem:[#allocation7 + $0x128] sm:$0xff]
        %v1005 = vld [vmem:[#allocation7 + $0x148] sm:$0xff]
        %v1006 = vld [vmem:[#allocation7 + $0x168] sm:$0xff]
        %v1007 = vld [vmem:[#allocation7 + $0x188] sm:$0xff]
        %v1008 = vld [vmem:[#allocation7 + $0x1a8] sm:$0xff]
        %v1009 = vld [vmem:[#allocation7 + $0x1c8] sm:$0xff]
        %v1010 = vld [vmem:[#allocation7 + $0x1e8] sm:$0xff]
        %v1027 = vunpack.c.l.b16 %v995
        %v1028 = vunpack.c.h.b16 %v995
        %v1029 = vunpack.c.l.b16 %v996
        %v1030 = vunpack.c.h.b16 %v996
        %v1031 = vunpack.c.l.b16 %v997
        %v1032 = vunpack.c.h.b16 %v997
        %v1033 = vunpack.c.l.b16 %v998
        %v1034 = vunpack.c.h.b16 %v998
        %v1035 = vunpack.c.l.b16 %v999
        %v1036 = vunpack.c.h.b16 %v999
        %v1037 = vunpack.c.l.b16 %v1000
        %v1038 = vunpack.c.h.b16 %v1000
        %v1039 = vunpack.c.l.b16 %v1001
        %v1040 = vunpack.c.h.b16 %v1001
        %v1041 = vunpack.c.l.b16 %v1002
        %v1042 = vunpack.c.h.b16 %v1002
        %v1043 = vunpack.c.l.b16 %v1003
        %v1044 = vunpack.c.h.b16 %v1003
        %v1045 = vunpack.c.l.b16 %v1004
        %v1046 = vunpack.c.h.b16 %v1004
        %v1047 = vunpack.c.l.b16 %v1005
        %v1048 = vunpack.c.h.b16 %v1005
        %v1049 = vunpack.c.l.b16 %v1006
        %v1050 = vunpack.c.h.b16 %v1006
        %v1051 = vunpack.c.l.b16 %v1007
        %v1052 = vunpack.c.h.b16 %v1007
        %v1053 = vunpack.c.l.b16 %v1008
        %v1054 = vunpack.c.h.b16 %v1008
        %v1055 = vunpack.c.l.b16 %v1009
        %v1056 = vunpack.c.h.b16 %v1009
        %v1057 = vunpack.c.l.b16 %v1010
        %v1058 = vunpack.c.h.b16 %v1010
        %v1059 = vpack.c.b16 %v1029, %v1027
        %v1060 = vpack.c.b16 %v1030, %v1028
        %v1061 = vpack.c.b16 %v1033, %v1031
        %v1062 = vpack.c.b16 %v1034, %v1032
        %v1063 = vpack.c.b16 %v1037, %v1035
        %v1064 = vpack.c.b16 %v1038, %v1036
        %v1065 = vpack.c.b16 %v1041, %v1039
        %v1066 = vpack.c.b16 %v1042, %v1040
        %v1067 = vpack.c.b16 %v1045, %v1043
        %v1068 = vpack.c.b16 %v1046, %v1044
        %v1069 = vpack.c.b16 %v1049, %v1047
        %v1070 = vpack.c.b16 %v1050, %v1048
        %v1071 = vpack.c.b16 %v1053, %v1051
        %v1072 = vpack.c.b16 %v1054, %v1052
        %v1073 = vpack.c.b16 %v1057, %v1055
        %v1074 = vpack.c.b16 %v1058, %v1056
        %1091 = vmatprep.subr.bf16.mxu0 %v1074
        %1092 = vmatpush1.bf16.msra.mxu0 %v1073
        %1093 = vmatprep.subr.bf16.mxu0 %v1072
        %1094 = vmatpush1.bf16.msra.mxu0 %v1071
        %1095 = vmatprep.subr.bf16.mxu0 %v1070
        %1096 = vmatpush1.bf16.msra.mxu0 %v1069
        %1097 = vmatprep.subr.bf16.mxu0 %v1068
        %1098 = vmatpush1.bf16.msra.mxu0 %v1067
        %1099 = vmatprep.subr.bf16.mxu0 %v1066
        %1100 = vmatpush1.bf16.msra.mxu0 %v1065
        %1101 = vmatprep.subr.bf16.mxu0 %v1064
        %1102 = vmatpush1.bf16.msra.mxu0 %v1063
        %1103 = vmatprep.subr.bf16.mxu0 %v1062
        %1104 = vmatpush1.bf16.msra.mxu0 %v1061
        %1105 = vmatprep.subr.bf16.mxu0 %v1060
        %1106 = vmatpush1.bf16.msra.mxu0 %v1059
        %1107 = vmatprep.subr.bf16.mxu0 0
        %1108 = vmatpush2.bf16.msra.mxu0 0
        %1109 = vmatprep.subr.bf16.mxu0 0
        %1110 = vmatpush2.bf16.msra.mxu0 0
        %1111 = vmatprep.subr.bf16.mxu0 0
        %1112 = vmatpush2.bf16.msra.mxu0 0
        %1113 = vmatprep.subr.bf16.mxu0 0
        %1114 = vmatpush2.bf16.msra.mxu0 0
        %1115 = vmatprep.subr.bf16.mxu0 0
        %1116 = vmatpush2.bf16.msra.mxu0 0
        %1117 = vmatprep.subr.bf16.mxu0 0
        %1118 = vmatpush2.bf16.msra.mxu0 0
        %1119 = vmatprep.subr.bf16.mxu0 0
        %1120 = vmatpush2.bf16.msra.mxu0 0
        %1121 = vmatprep.subr.bf16.mxu0 0
        %1122 = vmatpush2.bf16.msra.mxu0 0
        %1123 = vmatprep.mubr.bf16.mxu0 0
        %1124 = vmatmul.mubr.bf16.gmra.mxu0 %v393
        %v1125 = vpop.f32.mrf.mxu0
        %v1126 = vadd.f32 0.0, %v1125
        %v1127 = vpop.f32.mrf.mxu0
        %v1128 = vadd.f32 0.0, %v1127
        %v1129 = vpop.f32.mrf.mxu0
        %v1130 = vadd.f32 0.0, %v1129
        %v1131 = vpop.f32.mrf.mxu0
        %v1132 = vadd.f32 0.0, %v1131
        %1133 = vmatprep.mubr.bf16.mxu0 0
        %1134 = vmatmul.mubr.bf16.gmra.mxu0 %v394
        %v1135 = vpop.f32.mrf.mxu0
        %v1136 = vadd.f32 0.0, %v1135
        %v1137 = vpop.f32.mrf.mxu0
        %v1138 = vadd.f32 0.0, %v1137
        %v1139 = vpop.f32.mrf.mxu0
        %v1140 = vadd.f32 0.0, %v1139
        %v1141 = vpop.f32.mrf.mxu0
        %v1142 = vadd.f32 0.0, %v1141
        %1143 = vdwg.mxu0
        %v1144 = vld [vmem:[#allocation8 + $0x8] sm:$0xff]
        %v1145 = vld [vmem:[#allocation8 + $0x28] sm:$0xff]
        %v1146 = vld [vmem:[#allocation8 + $0x48] sm:$0xff]
        %v1147 = vld [vmem:[#allocation8 + $0x68] sm:$0xff]
        %v1148 = vld [vmem:[#allocation8 + $0x88] sm:$0xff]
        %v1149 = vld [vmem:[#allocation8 + $0xa8] sm:$0xff]
        %v1150 = vld [vmem:[#allocation8 + $0xc8] sm:$0xff]
        %v1151 = vld [vmem:[#allocation8 + $0xe8] sm:$0xff]
        %v1152 = vld [vmem:[#allocation8 + $0x108] sm:$0xff]
        %v1153 = vld [vmem:[#allocation8 + $0x128] sm:$0xff]
        %v1154 = vld [vmem:[#allocation8 + $0x148] sm:$0xff]
        %v1155 = vld [vmem:[#allocation8 + $0x168] sm:$0xff]
        %v1156 = vld [vmem:[#allocation8 + $0x188] sm:$0xff]
        %v1157 = vld [vmem:[#allocation8 + $0x1a8] sm:$0xff]
        %v1158 = vld [vmem:[#allocation8 + $0x1c8] sm:$0xff]
        %v1159 = vld [vmem:[#allocation8 + $0x1e8] sm:$0xff]
        %v1176 = vunpack.c.l.b16 %v1144
        %v1177 = vunpack.c.h.b16 %v1144
        %v1178 = vunpack.c.l.b16 %v1145
        %v1179 = vunpack.c.h.b16 %v1145
        %v1180 = vunpack.c.l.b16 %v1146
        %v1181 = vunpack.c.h.b16 %v1146
        %v1182 = vunpack.c.l.b16 %v1147
        %v1183 = vunpack.c.h.b16 %v1147
        %v1184 = vunpack.c.l.b16 %v1148
        %v1185 = vunpack.c.h.b16 %v1148
        %v1186 = vunpack.c.l.b16 %v1149
        %v1187 = vunpack.c.h.b16 %v1149
        %v1188 = vunpack.c.l.b16 %v1150
        %v1189 = vunpack.c.h.b16 %v1150
        %v1190 = vunpack.c.l.b16 %v1151
        %v1191 = vunpack.c.h.b16 %v1151
        %v1192 = vunpack.c.l.b16 %v1152
        %v1193 = vunpack.c.h.b16 %v1152
        %v1194 = vunpack.c.l.b16 %v1153
        %v1195 = vunpack.c.h.b16 %v1153
        %v1196 = vunpack.c.l.b16 %v1154
        %v1197 = vunpack.c.h.b16 %v1154
        %v1198 = vunpack.c.l.b16 %v1155
        %v1199 = vunpack.c.h.b16 %v1155
        %v1200 = vunpack.c.l.b16 %v1156
        %v1201 = vunpack.c.h.b16 %v1156
        %v1202 = vunpack.c.l.b16 %v1157
        %v1203 = vunpack.c.h.b16 %v1157
        %v1204 = vunpack.c.l.b16 %v1158
        %v1205 = vunpack.c.h.b16 %v1158
        %v1206 = vunpack.c.l.b16 %v1159
        %v1207 = vunpack.c.h.b16 %v1159
        %v1208 = vpack.c.b16 %v1178, %v1176
        %v1209 = vpack.c.b16 %v1179, %v1177
        %v1210 = vpack.c.b16 %v1182, %v1180
        %v1211 = vpack.c.b16 %v1183, %v1181
        %v1212 = vpack.c.b16 %v1186, %v1184
        %v1213 = vpack.c.b16 %v1187, %v1185
        %v1214 = vpack.c.b16 %v1190, %v1188
        %v1215 = vpack.c.b16 %v1191, %v1189
        %v1216 = vpack.c.b16 %v1194, %v1192
        %v1217 = vpack.c.b16 %v1195, %v1193
        %v1218 = vpack.c.b16 %v1198, %v1196
        %v1219 = vpack.c.b16 %v1199, %v1197
        %v1220 = vpack.c.b16 %v1202, %v1200
        %v1221 = vpack.c.b16 %v1203, %v1201
        %v1222 = vpack.c.b16 %v1206, %v1204
        %v1223 = vpack.c.b16 %v1207, %v1205
        %1240 = vmatprep.subr.bf16.mxu0 %v1223
        %1241 = vmatpush1.bf16.msra.mxu0 %v1222
        %1242 = vmatprep.subr.bf16.mxu0 %v1221
        %1243 = vmatpush1.bf16.msra.mxu0 %v1220
        %1244 = vmatprep.subr.bf16.mxu0 %v1219
        %1245 = vmatpush1.bf16.msra.mxu0 %v1218
        %1246 = vmatprep.subr.bf16.mxu0 %v1217
        %1247 = vmatpush1.bf16.msra.mxu0 %v1216
        %1248 = vmatprep.subr.bf16.mxu0 %v1215
        %1249 = vmatpush1.bf16.msra.mxu0 %v1214
        %1250 = vmatprep.subr.bf16.mxu0 %v1213
        %1251 = vmatpush1.bf16.msra.mxu0 %v1212
        %1252 = vmatprep.subr.bf16.mxu0 %v1211
        %1253 = vmatpush1.bf16.msra.mxu0 %v1210
        %1254 = vmatprep.subr.bf16.mxu0 %v1209
        %1255 = vmatpush1.bf16.msra.mxu0 %v1208
        %1256 = vmatprep.subr.bf16.mxu0 0
        %1257 = vmatpush2.bf16.msra.mxu0 0
        %1258 = vmatprep.subr.bf16.mxu0 0
        %1259 = vmatpush2.bf16.msra.mxu0 0
        %1260 = vmatprep.subr.bf16.mxu0 0
        %1261 = vmatpush2.bf16.msra.mxu0 0
        %1262 = vmatprep.subr.bf16.mxu0 0
        %1263 = vmatpush2.bf16.msra.mxu0 0
        %1264 = vmatprep.subr.bf16.mxu0 0
        %1265 = vmatpush2.bf16.msra.mxu0 0
        %1266 = vmatprep.subr.bf16.mxu0 0
        %1267 = vmatpush2.bf16.msra.mxu0 0
        %1268 = vmatprep.subr.bf16.mxu0 0
        %1269 = vmatpush2.bf16.msra.mxu0 0
        %1270 = vmatprep.subr.bf16.mxu0 0
        %1271 = vmatpush2.bf16.msra.mxu0 0
        %1272 = vmatprep.mubr.bf16.mxu0 0
        %1273 = vmatmul.mubr.bf16.gmra.mxu0 %v393
        %v1274 = vpop.f32.mrf.mxu0
        %v1275 = vadd.f32 0.0, %v1274
        %v1276 = vpop.f32.mrf.mxu0
        %v1277 = vadd.f32 0.0, %v1276
        %v1278 = vpop.f32.mrf.mxu0
        %v1279 = vadd.f32 0.0, %v1278
        %v1280 = vpop.f32.mrf.mxu0
        %v1281 = vadd.f32 0.0, %v1280
        %1282 = vmatprep.mubr.bf16.mxu0 0
        %1283 = vmatmul.mubr.bf16.gmra.mxu0 %v394
        %v1284 = vpop.f32.mrf.mxu0
        %v1285 = vadd.f32 0.0, %v1284
        %v1286 = vpop.f32.mrf.mxu0
        %v1287 = vadd.f32 0.0, %v1286
        %v1288 = vpop.f32.mrf.mxu0
        %v1289 = vadd.f32 0.0, %v1288
        %v1290 = vpop.f32.mrf.mxu0
        %v1291 = vadd.f32 0.0, %v1290
        %1292 = vdwg.mxu0
        %v1293 = vmul.f32 %v1126, %v1275
        %v1294 = vmul.f32 %v1128, %v1277
        %v1295 = vmul.f32 %v1130, %v1279
        %v1296 = vmul.f32 %v1132, %v1281
        %v1297 = vmul.f32 %v1136, %v1285
        %v1298 = vmul.f32 %v1138, %v1287
        %v1299 = vmul.f32 %v1140, %v1289
        %v1300 = vmul.f32 %v1142, %v1291
        %v1301 = vpack.c.bf16 %v1295, %v1293
        %v1302 = vpack.c.bf16 %v1296, %v1294
        %v1303 = vpack.c.bf16 %v1299, %v1297
        %v1304 = vpack.c.bf16 %v1300, %v1298
        %v1305 = vld [vmem:[#allocation5 + $0x80] sm:$0xf]
        %v1306 = vld [vmem:[#allocation5 + $0x84] sm:$0xf]
        %v1307 = vld [vmem:[#allocation5 + $0x88] sm:$0xf]
        %v1308 = vld [vmem:[#allocation5 + $0x8c] sm:$0xf]
        %v1309 = vld [vmem:[#allocation5 + $0x90] sm:$0xf]
        %v1310 = vld [vmem:[#allocation5 + $0x94] sm:$0xf]
        %v1311 = vld [vmem:[#allocation5 + $0x98] sm:$0xf]
        %v1312 = vld [vmem:[#allocation5 + $0x9c] sm:$0xf]
        %v1313 = vld [vmem:[#allocation5 + $0xa0] sm:$0xf]
        %v1314 = vld [vmem:[#allocation5 + $0xa4] sm:$0xf]
        %v1315 = vld [vmem:[#allocation5 + $0xa8] sm:$0xf]
        %v1316 = vld [vmem:[#allocation5 + $0xac] sm:$0xf]
        %v1317 = vld [vmem:[#allocation5 + $0xb0] sm:$0xf]
        %v1318 = vld [vmem:[#allocation5 + $0xb4] sm:$0xf]
        %v1319 = vld [vmem:[#allocation5 + $0xb8] sm:$0xf]
        %v1320 = vld [vmem:[#allocation5 + $0xbc] sm:$0xf]
        %v1321 = vld [vmem:[#allocation5 + $0xc0] sm:$0xf]
        %v1322 = vld [vmem:[#allocation5 + $0xc4] sm:$0xf]
        %v1323 = vld [vmem:[#allocation5 + $0xc8] sm:$0xf]
        %v1324 = vld [vmem:[#allocation5 + $0xcc] sm:$0xf]
        %v1325 = vld [vmem:[#allocation5 + $0xd0] sm:$0xf]
        %v1326 = vld [vmem:[#allocation5 + $0xd4] sm:$0xf]
        %v1327 = vld [vmem:[#allocation5 + $0xd8] sm:$0xf]
        %v1328 = vld [vmem:[#allocation5 + $0xdc] sm:$0xf]
        %v1329 = vld [vmem:[#allocation5 + $0xe0] sm:$0xf]
        %v1330 = vld [vmem:[#allocation5 + $0xe4] sm:$0xf]
        %v1331 = vld [vmem:[#allocation5 + $0xe8] sm:$0xf]
        %v1332 = vld [vmem:[#allocation5 + $0xec] sm:$0xf]
        %v1333 = vld [vmem:[#allocation5 + $0xf0] sm:$0xf]
        %v1334 = vld [vmem:[#allocation5 + $0xf4] sm:$0xf]
        %v1335 = vld [vmem:[#allocation5 + $0xf8] sm:$0xf]
        %v1336 = vld [vmem:[#allocation5 + $0xfc] sm:$0xf]
        %v1369 = vunpack.c.l.b16 %v1305
        %v1370 = vunpack.c.l.b16 %v1306
        %v1371 = vunpack.c.l.b16 %v1307
        %v1372 = vunpack.c.l.b16 %v1308
        %v1373 = vunpack.c.l.b16 %v1309
        %v1374 = vunpack.c.l.b16 %v1310
        %v1375 = vunpack.c.l.b16 %v1311
        %v1376 = vunpack.c.l.b16 %v1312
        %v1377 = vunpack.c.l.b16 %v1313
        %v1378 = vunpack.c.l.b16 %v1314
        %v1379 = vunpack.c.l.b16 %v1315
        %v1380 = vunpack.c.l.b16 %v1316
        %v1381 = vunpack.c.l.b16 %v1317
        %v1382 = vunpack.c.l.b16 %v1318
        %v1383 = vunpack.c.l.b16 %v1319
        %v1384 = vunpack.c.l.b16 %v1320
        %v1385 = vunpack.c.l.b16 %v1321
        %v1386 = vunpack.c.l.b16 %v1322
        %v1387 = vunpack.c.l.b16 %v1323
        %v1388 = vunpack.c.l.b16 %v1324
        %v1389 = vunpack.c.l.b16 %v1325
        %v1390 = vunpack.c.l.b16 %v1326
        %v1391 = vunpack.c.l.b16 %v1327
        %v1392 = vunpack.c.l.b16 %v1328
        %v1393 = vunpack.c.l.b16 %v1329
        %v1394 = vunpack.c.l.b16 %v1330
        %v1395 = vunpack.c.l.b16 %v1331
        %v1396 = vunpack.c.l.b16 %v1332
        %v1397 = vunpack.c.l.b16 %v1333
        %v1398 = vunpack.c.l.b16 %v1334
        %v1399 = vunpack.c.l.b16 %v1335
        %v1400 = vunpack.c.l.b16 %v1336
        %v1401 = vpack.c.b16 %v1370, %v1369
        %v1402 = vpack.c.b16 %v1372, %v1371
        %v1403 = vpack.c.b16 %v1374, %v1373
        %v1404 = vpack.c.b16 %v1376, %v1375
        %v1405 = vpack.c.b16 %v1378, %v1377
        %v1406 = vpack.c.b16 %v1380, %v1379
        %v1407 = vpack.c.b16 %v1382, %v1381
        %v1408 = vpack.c.b16 %v1384, %v1383
        %v1409 = vpack.c.b16 %v1386, %v1385
        %v1410 = vpack.c.b16 %v1388, %v1387
        %v1411 = vpack.c.b16 %v1390, %v1389
        %v1412 = vpack.c.b16 %v1392, %v1391
        %v1413 = vpack.c.b16 %v1394, %v1393
        %v1414 = vpack.c.b16 %v1396, %v1395
        %v1415 = vpack.c.b16 %v1398, %v1397
        %v1416 = vpack.c.b16 %v1400, %v1399
        %1433 = vmatprep.subr.bf16.mxu0 0
        %1434 = vmatpush1.bf16.msra.mxu0 %v1408
        %1435 = vmatprep.subr.bf16.mxu0 0
        %1436 = vmatpush1.bf16.msra.mxu0 %v1407
        %1437 = vmatprep.subr.bf16.mxu0 0
        %1438 = vmatpush1.bf16.msra.mxu0 %v1406
        %1439 = vmatprep.subr.bf16.mxu0 0
        %1440 = vmatpush1.bf16.msra.mxu0 %v1405
        %1441 = vmatprep.subr.bf16.mxu0 0
        %1442 = vmatpush1.bf16.msra.mxu0 %v1404
        %1443 = vmatprep.subr.bf16.mxu0 0
        %1444 = vmatpush1.bf16.msra.mxu0 %v1403
        %1445 = vmatprep.subr.bf16.mxu0 0
        %1446 = vmatpush1.bf16.msra.mxu0 %v1402
        %1447 = vmatprep.subr.bf16.mxu0 0
        %1448 = vmatpush1.bf16.msra.mxu0 %v1401
        %1449 = vmatprep.subr.bf16.mxu0 0
        %1450 = vmatpush2.bf16.msra.mxu0 %v1416
        %1451 = vmatprep.subr.bf16.mxu0 0
        %1452 = vmatpush2.bf16.msra.mxu0 %v1415
        %1453 = vmatprep.subr.bf16.mxu0 0
        %1454 = vmatpush2.bf16.msra.mxu0 %v1414
        %1455 = vmatprep.subr.bf16.mxu0 0
        %1456 = vmatpush2.bf16.msra.mxu0 %v1413
        %1457 = vmatprep.subr.bf16.mxu0 0
        %1458 = vmatpush2.bf16.msra.mxu0 %v1412
        %1459 = vmatprep.subr.bf16.mxu0 0
        %1460 = vmatpush2.bf16.msra.mxu0 %v1411
        %1461 = vmatprep.subr.bf16.mxu0 0
        %1462 = vmatpush2.bf16.msra.mxu0 %v1410
        %1463 = vmatprep.subr.bf16.mxu0 0
        %1464 = vmatpush2.bf16.msra.mxu0 %v1409
        %1465 = vmatprep.mubr.bf16.mxu0 %v1302
        %1466 = vmatmul.mubr.bf16.gmra.mxu0 %v1301
        %v1467 = vpop.f32.mrf.mxu0
        %v1468 = vadd.f32 0.0, %v1467
        %v1469 = vpop.f32.mrf.mxu0
        %v1470 = vpop.f32.mrf.mxu0
        %v1471 = vadd.f32 0.0, %v1470
        %v1472 = vpop.f32.mrf.mxu0
        %1473 = vmatprep.mubr.bf16.mxu0 %v1304
        %1474 = vmatmul.mubr.bf16.gmra.mxu0 %v1303
        %v1475 = vpop.f32.mrf.mxu0
        %v1476 = vadd.f32 0.0, %v1475
        %v1477 = vpop.f32.mrf.mxu0
        %v1478 = vpop.f32.mrf.mxu0
        %v1479 = vadd.f32 0.0, %v1478
        %v1480 = vpop.f32.mrf.mxu0
        %1481 = vdwg.mxu0
        %v1482 = vadd.f32 %v981, %v1468
        %v1483 = vadd.f32 %v984, %v1471
        %v1484 = vadd.f32 %v989, %v1476
        %v1485 = vadd.f32 %v992, %v1479
        %v1486 = vld [vmem:[#allocation7 + $0x10] sm:$0xff]
        %v1487 = vld [vmem:[#allocation7 + $0x30] sm:$0xff]
        %v1488 = vld [vmem:[#allocation7 + $0x50] sm:$0xff]
        %v1489 = vld [vmem:[#allocation7 + $0x70] sm:$0xff]
        %v1490 = vld [vmem:[#allocation7 + $0x90] sm:$0xff]
        %v1491 = vld [vmem:[#allocation7 + $0xb0] sm:$0xff]
        %v1492 = vld [vmem:[#allocation7 + $0xd0] sm:$0xff]
        %v1493 = vld [vmem:[#allocation7 + $0xf0] sm:$0xff]
        %v1494 = vld [vmem:[#allocation7 + $0x110] sm:$0xff]
        %v1495 = vld [vmem:[#allocation7 + $0x130] sm:$0xff]
        %v1496 = vld [vmem:[#allocation7 + $0x150] sm:$0xff]
        %v1497 = vld [vmem:[#allocation7 + $0x170] sm:$0xff]
        %v1498 = vld [vmem:[#allocation7 + $0x190] sm:$0xff]
        %v1499 = vld [vmem:[#allocation7 + $0x1b0] sm:$0xff]
        %v1500 = vld [vmem:[#allocation7 + $0x1d0] sm:$0xff]
        %v1501 = vld [vmem:[#allocation7 + $0x1f0] sm:$0xff]
        %v1518 = vunpack.c.l.b16 %v1486
        %v1519 = vunpack.c.h.b16 %v1486
        %v1520 = vunpack.c.l.b16 %v1487
        %v1521 = vunpack.c.h.b16 %v1487
        %v1522 = vunpack.c.l.b16 %v1488
        %v1523 = vunpack.c.h.b16 %v1488
        %v1524 = vunpack.c.l.b16 %v1489
        %v1525 = vunpack.c.h.b16 %v1489
        %v1526 = vunpack.c.l.b16 %v1490
        %v1527 = vunpack.c.h.b16 %v1490
        %v1528 = vunpack.c.l.b16 %v1491
        %v1529 = vunpack.c.h.b16 %v1491
        %v1530 = vunpack.c.l.b16 %v1492
        %v1531 = vunpack.c.h.b16 %v1492
        %v1532 = vunpack.c.l.b16 %v1493
        %v1533 = vunpack.c.h.b16 %v1493
        %v1534 = vunpack.c.l.b16 %v1494
        %v1535 = vunpack.c.h.b16 %v1494
        %v1536 = vunpack.c.l.b16 %v1495
        %v1537 = vunpack.c.h.b16 %v1495
        %v1538 = vunpack.c.l.b16 %v1496
        %v1539 = vunpack.c.h.b16 %v1496
        %v1540 = vunpack.c.l.b16 %v1497
        %v1541 = vunpack.c.h.b16 %v1497
        %v1542 = vunpack.c.l.b16 %v1498
        %v1543 = vunpack.c.h.b16 %v1498
        %v1544 = vunpack.c.l.b16 %v1499
        %v1545 = vunpack.c.h.b16 %v1499
        %v1546 = vunpack.c.l.b16 %v1500
        %v1547 = vunpack.c.h.b16 %v1500
        %v1548 = vunpack.c.l.b16 %v1501
        %v1549 = vunpack.c.h.b16 %v1501
        %v1550 = vpack.c.b16 %v1520, %v1518
        %v1551 = vpack.c.b16 %v1521, %v1519
        %v1552 = vpack.c.b16 %v1524, %v1522
        %v1553 = vpack.c.b16 %v1525, %v1523
        %v1554 = vpack.c.b16 %v1528, %v1526
        %v1555 = vpack.c.b16 %v1529, %v1527
        %v1556 = vpack.c.b16 %v1532, %v1530
        %v1557 = vpack.c.b16 %v1533, %v1531
        %v1558 = vpack.c.b16 %v1536, %v1534
        %v1559 = vpack.c.b16 %v1537, %v1535
        %v1560 = vpack.c.b16 %v1540, %v1538
        %v1561 = vpack.c.b16 %v1541, %v1539
        %v1562 = vpack.c.b16 %v1544, %v1542
        %v1563 = vpack.c.b16 %v1545, %v1543
        %v1564 = vpack.c.b16 %v1548, %v1546
        %v1565 = vpack.c.b16 %v1549, %v1547
        %1582 = vmatprep.subr.bf16.mxu0 %v1565
        %1583 = vmatpush1.bf16.msra.mxu0 %v1564
        %1584 = vmatprep.subr.bf16.mxu0 %v1563
        %1585 = vmatpush1.bf16.msra.mxu0 %v1562
        %1586 = vmatprep.subr.bf16.mxu0 %v1561
        %1587 = vmatpush1.bf16.msra.mxu0 %v1560
        %1588 = vmatprep.subr.bf16.mxu0 %v1559
        %1589 = vmatpush1.bf16.msra.mxu0 %v1558
        %1590 = vmatprep.subr.bf16.mxu0 %v1557
        %1591 = vmatpush1.bf16.msra.mxu0 %v1556
        %1592 = vmatprep.subr.bf16.mxu0 %v1555
        %1593 = vmatpush1.bf16.msra.mxu0 %v1554
        %1594 = vmatprep.subr.bf16.mxu0 %v1553
        %1595 = vmatpush1.bf16.msra.mxu0 %v1552
        %1596 = vmatprep.subr.bf16.mxu0 %v1551
        %1597 = vmatpush1.bf16.msra.mxu0 %v1550
        %1598 = vmatprep.subr.bf16.mxu0 0
        %1599 = vmatpush2.bf16.msra.mxu0 0
        %1600 = vmatprep.subr.bf16.mxu0 0
        %1601 = vmatpush2.bf16.msra.mxu0 0
        %1602 = vmatprep.subr.bf16.mxu0 0
        %1603 = vmatpush2.bf16.msra.mxu0 0
        %1604 = vmatprep.subr.bf16.mxu0 0
        %1605 = vmatpush2.bf16.msra.mxu0 0
        %1606 = vmatprep.subr.bf16.mxu0 0
        %1607 = vmatpush2.bf16.msra.mxu0 0
        %1608 = vmatprep.subr.bf16.mxu0 0
        %1609 = vmatpush2.bf16.msra.mxu0 0
        %1610 = vmatprep.subr.bf16.mxu0 0
        %1611 = vmatpush2.bf16.msra.mxu0 0
        %1612 = vmatprep.subr.bf16.mxu0 0
        %1613 = vmatpush2.bf16.msra.mxu0 0
        %1614 = vmatprep.mubr.bf16.mxu0 0
        %1615 = vmatmul.mubr.bf16.gmra.mxu0 %v393
        %v1616 = vpop.f32.mrf.mxu0
        %v1617 = vadd.f32 0.0, %v1616
        %v1618 = vpop.f32.mrf.mxu0
        %v1619 = vadd.f32 0.0, %v1618
        %v1620 = vpop.f32.mrf.mxu0
        %v1621 = vadd.f32 0.0, %v1620
        %v1622 = vpop.f32.mrf.mxu0
        %v1623 = vadd.f32 0.0, %v1622
        %1624 = vmatprep.mubr.bf16.mxu0 0
        %1625 = vmatmul.mubr.bf16.gmra.mxu0 %v394
        %v1626 = vpop.f32.mrf.mxu0
        %v1627 = vadd.f32 0.0, %v1626
        %v1628 = vpop.f32.mrf.mxu0
        %v1629 = vadd.f32 0.0, %v1628
        %v1630 = vpop.f32.mrf.mxu0
        %v1631 = vadd.f32 0.0, %v1630
        %v1632 = vpop.f32.mrf.mxu0
        %v1633 = vadd.f32 0.0, %v1632
        %1634 = vdwg.mxu0
        %v1635 = vld [vmem:[#allocation8 + $0x10] sm:$0xff]
        %v1636 = vld [vmem:[#allocation8 + $0x30] sm:$0xff]
        %v1637 = vld [vmem:[#allocation8 + $0x50] sm:$0xff]
        %v1638 = vld [vmem:[#allocation8 + $0x70] sm:$0xff]
        %v1639 = vld [vmem:[#allocation8 + $0x90] sm:$0xff]
        %v1640 = vld [vmem:[#allocation8 + $0xb0] sm:$0xff]
        %v1641 = vld [vmem:[#allocation8 + $0xd0] sm:$0xff]
        %v1642 = vld [vmem:[#allocation8 + $0xf0] sm:$0xff]
        %v1643 = vld [vmem:[#allocation8 + $0x110] sm:$0xff]
        %v1644 = vld [vmem:[#allocation8 + $0x130] sm:$0xff]
        %v1645 = vld [vmem:[#allocation8 + $0x150] sm:$0xff]
        %v1646 = vld [vmem:[#allocation8 + $0x170] sm:$0xff]
        %v1647 = vld [vmem:[#allocation8 + $0x190] sm:$0xff]
        %v1648 = vld [vmem:[#allocation8 + $0x1b0] sm:$0xff]
        %v1649 = vld [vmem:[#allocation8 + $0x1d0] sm:$0xff]
        %v1650 = vld [vmem:[#allocation8 + $0x1f0] sm:$0xff]
        %v1667 = vunpack.c.l.b16 %v1635
        %v1668 = vunpack.c.h.b16 %v1635
        %v1669 = vunpack.c.l.b16 %v1636
        %v1670 = vunpack.c.h.b16 %v1636
        %v1671 = vunpack.c.l.b16 %v1637
        %v1672 = vunpack.c.h.b16 %v1637
        %v1673 = vunpack.c.l.b16 %v1638
        %v1674 = vunpack.c.h.b16 %v1638
        %v1675 = vunpack.c.l.b16 %v1639
        %v1676 = vunpack.c.h.b16 %v1639
        %v1677 = vunpack.c.l.b16 %v1640
        %v1678 = vunpack.c.h.b16 %v1640
        %v1679 = vunpack.c.l.b16 %v1641
        %v1680 = vunpack.c.h.b16 %v1641
        %v1681 = vunpack.c.l.b16 %v1642
        %v1682 = vunpack.c.h.b16 %v1642
        %v1683 = vunpack.c.l.b16 %v1643
        %v1684 = vunpack.c.h.b16 %v1643
        %v1685 = vunpack.c.l.b16 %v1644
        %v1686 = vunpack.c.h.b16 %v1644
        %v1687 = vunpack.c.l.b16 %v1645
        %v1688 = vunpack.c.h.b16 %v1645
        %v1689 = vunpack.c.l.b16 %v1646
        %v1690 = vunpack.c.h.b16 %v1646
        %v1691 = vunpack.c.l.b16 %v1647
        %v1692 = vunpack.c.h.b16 %v1647
        %v1693 = vunpack.c.l.b16 %v1648
        %v1694 = vunpack.c.h.b16 %v1648
        %v1695 = vunpack.c.l.b16 %v1649
        %v1696 = vunpack.c.h.b16 %v1649
        %v1697 = vunpack.c.l.b16 %v1650
        %v1698 = vunpack.c.h.b16 %v1650
        %v1699 = vpack.c.b16 %v1669, %v1667
        %v1700 = vpack.c.b16 %v1670, %v1668
        %v1701 = vpack.c.b16 %v1673, %v1671
        %v1702 = vpack.c.b16 %v1674, %v1672
        %v1703 = vpack.c.b16 %v1677, %v1675
        %v1704 = vpack.c.b16 %v1678, %v1676
        %v1705 = vpack.c.b16 %v1681, %v1679
        %v1706 = vpack.c.b16 %v1682, %v1680
        %v1707 = vpack.c.b16 %v1685, %v1683
        %v1708 = vpack.c.b16 %v1686, %v1684
        %v1709 = vpack.c.b16 %v1689, %v1687
        %v1710 = vpack.c.b16 %v1690, %v1688
        %v1711 = vpack.c.b16 %v1693, %v1691
        %v1712 = vpack.c.b16 %v1694, %v1692
        %v1713 = vpack.c.b16 %v1697, %v1695
        %v1714 = vpack.c.b16 %v1698, %v1696
        %1731 = vmatprep.subr.bf16.mxu0 %v1714
        %1732 = vmatpush1.bf16.msra.mxu0 %v1713
        %1733 = vmatprep.subr.bf16.mxu0 %v1712
        %1734 = vmatpush1.bf16.msra.mxu0 %v1711
        %1735 = vmatprep.subr.bf16.mxu0 %v1710
        %1736 = vmatpush1.bf16.msra.mxu0 %v1709
        %1737 = vmatprep.subr.bf16.mxu0 %v1708
        %1738 = vmatpush1.bf16.msra.mxu0 %v1707
        %1739 = vmatprep.subr.bf16.mxu0 %v1706
        %1740 = vmatpush1.bf16.msra.mxu0 %v1705
        %1741 = vmatprep.subr.bf16.mxu0 %v1704
        %1742 = vmatpush1.bf16.msra.mxu0 %v1703
        %1743 = vmatprep.subr.bf16.mxu0 %v1702
        %1744 = vmatpush1.bf16.msra.mxu0 %v1701
        %1745 = vmatprep.subr.bf16.mxu0 %v1700
        %1746 = vmatpush1.bf16.msra.mxu0 %v1699
        %1747 = vmatprep.subr.bf16.mxu0 0
        %1748 = vmatpush2.bf16.msra.mxu0 0
        %1749 = vmatprep.subr.bf16.mxu0 0
        %1750 = vmatpush2.bf16.msra.mxu0 0
        %1751 = vmatprep.subr.bf16.mxu0 0
        %1752 = vmatpush2.bf16.msra.mxu0 0
        %1753 = vmatprep.subr.bf16.mxu0 0
        %1754 = vmatpush2.bf16.msra.mxu0 0
        %1755 = vmatprep.subr.bf16.mxu0 0
        %1756 = vmatpush2.bf16.msra.mxu0 0
        %1757 = vmatprep.subr.bf16.mxu0 0
        %1758 = vmatpush2.bf16.msra.mxu0 0
        %1759 = vmatprep.subr.bf16.mxu0 0
        %1760 = vmatpush2.bf16.msra.mxu0 0
        %1761 = vmatprep.subr.bf16.mxu0 0
        %1762 = vmatpush2.bf16.msra.mxu0 0
        %1763 = vmatprep.mubr.bf16.mxu0 0
        %1764 = vmatmul.mubr.bf16.gmra.mxu0 %v393
        %v1765 = vpop.f32.mrf.mxu0
        %v1766 = vadd.f32 0.0, %v1765
        %v1767 = vpop.f32.mrf.mxu0
        %v1768 = vadd.f32 0.0, %v1767
        %v1769 = vpop.f32.mrf.mxu0
        %v1770 = vadd.f32 0.0, %v1769
        %v1771 = vpop.f32.mrf.mxu0
        %v1772 = vadd.f32 0.0, %v1771
        %1773 = vmatprep.mubr.bf16.mxu0 0
        %1774 = vmatmul.mubr.bf16.gmra.mxu0 %v394
        %v1775 = vpop.f32.mrf.mxu0
        %v1776 = vadd.f32 0.0, %v1775
        %v1777 = vpop.f32.mrf.mxu0
        %v1778 = vadd.f32 0.0, %v1777
        %v1779 = vpop.f32.mrf.mxu0
        %v1780 = vadd.f32 0.0, %v1779
        %v1781 = vpop.f32.mrf.mxu0
        %v1782 = vadd.f32 0.0, %v1781
        %1783 = vdwg.mxu0
        %v1784 = vmul.f32 %v1617, %v1766
        %v1785 = vmul.f32 %v1619, %v1768
        %v1786 = vmul.f32 %v1621, %v1770
        %v1787 = vmul.f32 %v1623, %v1772
        %v1788 = vmul.f32 %v1627, %v1776
        %v1789 = vmul.f32 %v1629, %v1778
        %v1790 = vmul.f32 %v1631, %v1780
        %v1791 = vmul.f32 %v1633, %v1782
        %v1792 = vpack.c.bf16 %v1786, %v1784
        %v1793 = vpack.c.bf16 %v1787, %v1785
        %v1794 = vpack.c.bf16 %v1790, %v1788
        %v1795 = vpack.c.bf16 %v1791, %v1789
        %v1796 = vld [vmem:[#allocation5 + $0x100] sm:$0xf]
        %v1797 = vld [vmem:[#allocation5 + $0x104] sm:$0xf]
        %v1798 = vld [vmem:[#allocation5 + $0x108] sm:$0xf]
        %v1799 = vld [vmem:[#allocation5 + $0x10c] sm:$0xf]
        %v1800 = vld [vmem:[#allocation5 + $0x110] sm:$0xf]
        %v1801 = vld [vmem:[#allocation5 + $0x114] sm:$0xf]
        %v1802 = vld [vmem:[#allocation5 + $0x118] sm:$0xf]
        %v1803 = vld [vmem:[#allocation5 + $0x11c] sm:$0xf]
        %v1804 = vld [vmem:[#allocation5 + $0x120] sm:$0xf]
        %v1805 = vld [vmem:[#allocation5 + $0x124] sm:$0xf]
        %v1806 = vld [vmem:[#allocation5 + $0x128] sm:$0xf]
        %v1807 = vld [vmem:[#allocation5 + $0x12c] sm:$0xf]
        %v1808 = vld [vmem:[#allocation5 + $0x130] sm:$0xf]
        %v1809 = vld [vmem:[#allocation5 + $0x134] sm:$0xf]
        %v1810 = vld [vmem:[#allocation5 + $0x138] sm:$0xf]
        %v1811 = vld [vmem:[#allocation5 + $0x13c] sm:$0xf]
        %v1812 = vld [vmem:[#allocation5 + $0x140] sm:$0xf]
        %v1813 = vld [vmem:[#allocation5 + $0x144] sm:$0xf]
        %v1814 = vld [vmem:[#allocation5 + $0x148] sm:$0xf]
        %v1815 = vld [vmem:[#allocation5 + $0x14c] sm:$0xf]
        %v1816 = vld [vmem:[#allocation5 + $0x150] sm:$0xf]
        %v1817 = vld [vmem:[#allocation5 + $0x154] sm:$0xf]
        %v1818 = vld [vmem:[#allocation5 + $0x158] sm:$0xf]
        %v1819 = vld [vmem:[#allocation5 + $0x15c] sm:$0xf]
        %v1820 = vld [vmem:[#allocation5 + $0x160] sm:$0xf]
        %v1821 = vld [vmem:[#allocation5 + $0x164] sm:$0xf]
        %v1822 = vld [vmem:[#allocation5 + $0x168] sm:$0xf]
        %v1823 = vld [vmem:[#allocation5 + $0x16c] sm:$0xf]
        %v1824 = vld [vmem:[#allocation5 + $0x170] sm:$0xf]
        %v1825 = vld [vmem:[#allocation5 + $0x174] sm:$0xf]
        %v1826 = vld [vmem:[#allocation5 + $0x178] sm:$0xf]
        %v1827 = vld [vmem:[#allocation5 + $0x17c] sm:$0xf]
        %v1860 = vunpack.c.l.b16 %v1796
        %v1861 = vunpack.c.l.b16 %v1797
        %v1862 = vunpack.c.l.b16 %v1798
        %v1863 = vunpack.c.l.b16 %v1799
        %v1864 = vunpack.c.l.b16 %v1800
        %v1865 = vunpack.c.l.b16 %v1801
        %v1866 = vunpack.c.l.b16 %v1802
        %v1867 = vunpack.c.l.b16 %v1803
        %v1868 = vunpack.c.l.b16 %v1804
        %v1869 = vunpack.c.l.b16 %v1805
        %v1870 = vunpack.c.l.b16 %v1806
        %v1871 = vunpack.c.l.b16 %v1807
        %v1872 = vunpack.c.l.b16 %v1808
        %v1873 = vunpack.c.l.b16 %v1809
        %v1874 = vunpack.c.l.b16 %v1810
        %v1875 = vunpack.c.l.b16 %v1811
        %v1876 = vunpack.c.l.b16 %v1812
        %v1877 = vunpack.c.l.b16 %v1813
        %v1878 = vunpack.c.l.b16 %v1814
        %v1879 = vunpack.c.l.b16 %v1815
        %v1880 = vunpack.c.l.b16 %v1816
        %v1881 = vunpack.c.l.b16 %v1817
        %v1882 = vunpack.c.l.b16 %v1818
        %v1883 = vunpack.c.l.b16 %v1819
        %v1884 = vunpack.c.l.b16 %v1820
        %v1885 = vunpack.c.l.b16 %v1821
        %v1886 = vunpack.c.l.b16 %v1822
        %v1887 = vunpack.c.l.b16 %v1823
        %v1888 = vunpack.c.l.b16 %v1824
        %v1889 = vunpack.c.l.b16 %v1825
        %v1890 = vunpack.c.l.b16 %v1826
        %v1891 = vunpack.c.l.b16 %v1827
        %v1892 = vpack.c.b16 %v1861, %v1860
        %v1893 = vpack.c.b16 %v1863, %v1862
        %v1894 = vpack.c.b16 %v1865, %v1864
        %v1895 = vpack.c.b16 %v1867, %v1866
        %v1896 = vpack.c.b16 %v1869, %v1868
        %v1897 = vpack.c.b16 %v1871, %v1870
        %v1898 = vpack.c.b16 %v1873, %v1872
        %v1899 = vpack.c.b16 %v1875, %v1874
        %v1900 = vpack.c.b16 %v1877, %v1876
        %v1901 = vpack.c.b16 %v1879, %v1878
        %v1902 = vpack.c.b16 %v1881, %v1880
        %v1903 = vpack.c.b16 %v1883, %v1882
        %v1904 = vpack.c.b16 %v1885, %v1884
        %v1905 = vpack.c.b16 %v1887, %v1886
        %v1906 = vpack.c.b16 %v1889, %v1888
        %v1907 = vpack.c.b16 %v1891, %v1890
        %1924 = vmatprep.subr.bf16.mxu0 0
        %1925 = vmatpush1.bf16.msra.mxu0 %v1899
        %1926 = vmatprep.subr.bf16.mxu0 0
        %1927 = vmatpush1.bf16.msra.mxu0 %v1898
        %1928 = vmatprep.subr.bf16.mxu0 0
        %1929 = vmatpush1.bf16.msra.mxu0 %v1897
        %1930 = vmatprep.subr.bf16.mxu0 0
        %1931 = vmatpush1.bf16.msra.mxu0 %v1896
        %1932 = vmatprep.subr.bf16.mxu0 0
        %1933 = vmatpush1.bf16.msra.mxu0 %v1895
        %1934 = vmatprep.subr.bf16.mxu0 0
        %1935 = vmatpush1.bf16.msra.mxu0 %v1894
        %1936 = vmatprep.subr.bf16.mxu0 0
        %1937 = vmatpush1.bf16.msra.mxu0 %v1893
        %1938 = vmatprep.subr.bf16.mxu0 0
        %1939 = vmatpush1.bf16.msra.mxu0 %v1892
        %1940 = vmatprep.subr.bf16.mxu0 0
        %1941 = vmatpush2.bf16.msra.mxu0 %v1907
        %1942 = vmatprep.subr.bf16.mxu0 0
        %1943 = vmatpush2.bf16.msra.mxu0 %v1906
        %1944 = vmatprep.subr.bf16.mxu0 0
        %1945 = vmatpush2.bf16.msra.mxu0 %v1905
        %1946 = vmatprep.subr.bf16.mxu0 0
        %1947 = vmatpush2.bf16.msra.mxu0 %v1904
        %1948 = vmatprep.subr.bf16.mxu0 0
        %1949 = vmatpush2.bf16.msra.mxu0 %v1903
        %1950 = vmatprep.subr.bf16.mxu0 0
        %1951 = vmatpush2.bf16.msra.mxu0 %v1902
        %1952 = vmatprep.subr.bf16.mxu0 0
        %1953 = vmatpush2.bf16.msra.mxu0 %v1901
        %1954 = vmatprep.subr.bf16.mxu0 0
        %1955 = vmatpush2.bf16.msra.mxu0 %v1900
        %1956 = vmatprep.mubr.bf16.mxu0 %v1793
        %1957 = vmatmul.mubr.bf16.gmra.mxu0 %v1792
        %v1958 = vpop.f32.mrf.mxu0
        %v1959 = vadd.f32 0.0, %v1958
        %v1960 = vpop.f32.mrf.mxu0
        %v1961 = vpop.f32.mrf.mxu0
        %v1962 = vadd.f32 0.0, %v1961
        %v1963 = vpop.f32.mrf.mxu0
        %1964 = vmatprep.mubr.bf16.mxu0 %v1795
        %1965 = vmatmul.mubr.bf16.gmra.mxu0 %v1794
        %v1966 = vpop.f32.mrf.mxu0
        %v1967 = vadd.f32 0.0, %v1966
        %v1968 = vpop.f32.mrf.mxu0
        %v1969 = vpop.f32.mrf.mxu0
        %v1970 = vadd.f32 0.0, %v1969
        %v1971 = vpop.f32.mrf.mxu0
        %1972 = vdwg.mxu0
        %v1973 = vadd.f32 %v1482, %v1959
        %v1974 = vadd.f32 %v1483, %v1962
        %v1975 = vadd.f32 %v1484, %v1967
        %v1976 = vadd.f32 %v1485, %v1970
        %v1977 = vld [vmem:[#allocation7 + $0x18] sm:$0xff]
        %v1978 = vld [vmem:[#allocation7 + $0x38] sm:$0xff]
        %v1979 = vld [vmem:[#allocation7 + $0x58] sm:$0xff]
        %v1980 = vld [vmem:[#allocation7 + $0x78] sm:$0xff]
        %v1981 = vld [vmem:[#allocation7 + $0x98] sm:$0xff]
        %v1982 = vld [vmem:[#allocation7 + $0xb8] sm:$0xff]
        %v1983 = vld [vmem:[#allocation7 + $0xd8] sm:$0xff]
        %v1984 = vld [vmem:[#allocation7 + $0xf8] sm:$0xff]
        %v1985 = vld [vmem:[#allocation7 + $0x118] sm:$0xff]
        %v1986 = vld [vmem:[#allocation7 + $0x138] sm:$0xff]
        %v1987 = vld [vmem:[#allocation7 + $0x158] sm:$0xff]
        %v1988 = vld [vmem:[#allocation7 + $0x178] sm:$0xff]
        %v1989 = vld [vmem:[#allocation7 + $0x198] sm:$0xff]
        %v1990 = vld [vmem:[#allocation7 + $0x1b8] sm:$0xff]
        %v1991 = vld [vmem:[#allocation7 + $0x1d8] sm:$0xff]
        %v1992 = vld [vmem:[#allocation7 + $0x1f8] sm:$0xff]
        %v2009 = vunpack.c.l.b16 %v1977
        %v2010 = vunpack.c.h.b16 %v1977
        %v2011 = vunpack.c.l.b16 %v1978
        %v2012 = vunpack.c.h.b16 %v1978
        %v2013 = vunpack.c.l.b16 %v1979
        %v2014 = vunpack.c.h.b16 %v1979
        %v2015 = vunpack.c.l.b16 %v1980
        %v2016 = vunpack.c.h.b16 %v1980
        %v2017 = vunpack.c.l.b16 %v1981
        %v2018 = vunpack.c.h.b16 %v1981
        %v2019 = vunpack.c.l.b16 %v1982
        %v2020 = vunpack.c.h.b16 %v1982
        %v2021 = vunpack.c.l.b16 %v1983
        %v2022 = vunpack.c.h.b16 %v1983
        %v2023 = vunpack.c.l.b16 %v1984
        %v2024 = vunpack.c.h.b16 %v1984
        %v2025 = vunpack.c.l.b16 %v1985
        %v2026 = vunpack.c.h.b16 %v1985
        %v2027 = vunpack.c.l.b16 %v1986
        %v2028 = vunpack.c.h.b16 %v1986
        %v2029 = vunpack.c.l.b16 %v1987
        %v2030 = vunpack.c.h.b16 %v1987
        %v2031 = vunpack.c.l.b16 %v1988
        %v2032 = vunpack.c.h.b16 %v1988
        %v2033 = vunpack.c.l.b16 %v1989
        %v2034 = vunpack.c.h.b16 %v1989
        %v2035 = vunpack.c.l.b16 %v1990
        %v2036 = vunpack.c.h.b16 %v1990
        %v2037 = vunpack.c.l.b16 %v1991
        %v2038 = vunpack.c.h.b16 %v1991
        %v2039 = vunpack.c.l.b16 %v1992
        %v2040 = vunpack.c.h.b16 %v1992
        %v2041 = vpack.c.b16 %v2011, %v2009
        %v2042 = vpack.c.b16 %v2012, %v2010
        %v2043 = vpack.c.b16 %v2015, %v2013
        %v2044 = vpack.c.b16 %v2016, %v2014
        %v2045 = vpack.c.b16 %v2019, %v2017
        %v2046 = vpack.c.b16 %v2020, %v2018
        %v2047 = vpack.c.b16 %v2023, %v2021
        %v2048 = vpack.c.b16 %v2024, %v2022
        %v2049 = vpack.c.b16 %v2027, %v2025
        %v2050 = vpack.c.b16 %v2028, %v2026
        %v2051 = vpack.c.b16 %v2031, %v2029
        %v2052 = vpack.c.b16 %v2032, %v2030
        %v2053 = vpack.c.b16 %v2035, %v2033
        %v2054 = vpack.c.b16 %v2036, %v2034
        %v2055 = vpack.c.b16 %v2039, %v2037
        %v2056 = vpack.c.b16 %v2040, %v2038
        %2073 = vmatprep.subr.bf16.mxu0 %v2056
        %2074 = vmatpush1.bf16.msra.mxu0 %v2055
        %2075 = vmatprep.subr.bf16.mxu0 %v2054
        %2076 = vmatpush1.bf16.msra.mxu0 %v2053
        %2077 = vmatprep.subr.bf16.mxu0 %v2052
        %2078 = vmatpush1.bf16.msra.mxu0 %v2051
        %2079 = vmatprep.subr.bf16.mxu0 %v2050
        %2080 = vmatpush1.bf16.msra.mxu0 %v2049
        %2081 = vmatprep.subr.bf16.mxu0 %v2048
        %2082 = vmatpush1.bf16.msra.mxu0 %v2047
        %2083 = vmatprep.subr.bf16.mxu0 %v2046
        %2084 = vmatpush1.bf16.msra.mxu0 %v2045
        %2085 = vmatprep.subr.bf16.mxu0 %v2044
        %2086 = vmatpush1.bf16.msra.mxu0 %v2043
        %2087 = vmatprep.subr.bf16.mxu0 %v2042
        %2088 = vmatpush1.bf16.msra.mxu0 %v2041
        %2089 = vmatprep.subr.bf16.mxu0 0
        %2090 = vmatpush2.bf16.msra.mxu0 0
        %2091 = vmatprep.subr.bf16.mxu0 0
        %2092 = vmatpush2.bf16.msra.mxu0 0
        %2093 = vmatprep.subr.bf16.mxu0 0
        %2094 = vmatpush2.bf16.msra.mxu0 0
        %2095 = vmatprep.subr.bf16.mxu0 0
        %2096 = vmatpush2.bf16.msra.mxu0 0
        %2097 = vmatprep.subr.bf16.mxu0 0
        %2098 = vmatpush2.bf16.msra.mxu0 0
        %2099 = vmatprep.subr.bf16.mxu0 0
        %2100 = vmatpush2.bf16.msra.mxu0 0
        %2101 = vmatprep.subr.bf16.mxu0 0
        %2102 = vmatpush2.bf16.msra.mxu0 0
        %2103 = vmatprep.subr.bf16.mxu0 0
        %2104 = vmatpush2.bf16.msra.mxu0 0
        %2105 = vmatprep.mubr.bf16.mxu0 0
        %2106 = vmatmul.mubr.bf16.gmra.mxu0 %v393
        %v2107 = vpop.f32.mrf.mxu0
        %v2108 = vadd.f32 0.0, %v2107
        %v2109 = vpop.f32.mrf.mxu0
        %v2110 = vadd.f32 0.0, %v2109
        %v2111 = vpop.f32.mrf.mxu0
        %v2112 = vadd.f32 0.0, %v2111
        %v2113 = vpop.f32.mrf.mxu0
        %v2114 = vadd.f32 0.0, %v2113
        %2115 = vmatprep.mubr.bf16.mxu0 0
        %2116 = vmatmul.mubr.bf16.gmra.mxu0 %v394
        %v2117 = vpop.f32.mrf.mxu0
        %v2118 = vadd.f32 0.0, %v2117
        %v2119 = vpop.f32.mrf.mxu0
        %v2120 = vadd.f32 0.0, %v2119
        %v2121 = vpop.f32.mrf.mxu0
        %v2122 = vadd.f32 0.0, %v2121
        %v2123 = vpop.f32.mrf.mxu0
        %v2124 = vadd.f32 0.0, %v2123
        %2125 = vdwg.mxu0
        %v2126 = vld [vmem:[#allocation8 + $0x18] sm:$0xff]
        %v2127 = vld [vmem:[#allocation8 + $0x38] sm:$0xff]
        %v2128 = vld [vmem:[#allocation8 + $0x58] sm:$0xff]
        %v2129 = vld [vmem:[#allocation8 + $0x78] sm:$0xff]
        %v2130 = vld [vmem:[#allocation8 + $0x98] sm:$0xff]
        %v2131 = vld [vmem:[#allocation8 + $0xb8] sm:$0xff]
        %v2132 = vld [vmem:[#allocation8 + $0xd8] sm:$0xff]
        %v2133 = vld [vmem:[#allocation8 + $0xf8] sm:$0xff]
        %v2134 = vld [vmem:[#allocation8 + $0x118] sm:$0xff]
        %v2135 = vld [vmem:[#allocation8 + $0x138] sm:$0xff]
        %v2136 = vld [vmem:[#allocation8 + $0x158] sm:$0xff]
        %v2137 = vld [vmem:[#allocation8 + $0x178] sm:$0xff]
        %v2138 = vld [vmem:[#allocation8 + $0x198] sm:$0xff]
        %v2139 = vld [vmem:[#allocation8 + $0x1b8] sm:$0xff]
        %v2140 = vld [vmem:[#allocation8 + $0x1d8] sm:$0xff]
        %v2141 = vld [vmem:[#allocation8 + $0x1f8] sm:$0xff]
        %v2158 = vunpack.c.l.b16 %v2126
        %v2159 = vunpack.c.h.b16 %v2126
        %v2160 = vunpack.c.l.b16 %v2127
        %v2161 = vunpack.c.h.b16 %v2127
        %v2162 = vunpack.c.l.b16 %v2128
        %v2163 = vunpack.c.h.b16 %v2128
        %v2164 = vunpack.c.l.b16 %v2129
        %v2165 = vunpack.c.h.b16 %v2129
        %v2166 = vunpack.c.l.b16 %v2130
        %v2167 = vunpack.c.h.b16 %v2130
        %v2168 = vunpack.c.l.b16 %v2131
        %v2169 = vunpack.c.h.b16 %v2131
        %v2170 = vunpack.c.l.b16 %v2132
        %v2171 = vunpack.c.h.b16 %v2132
        %v2172 = vunpack.c.l.b16 %v2133
        %v2173 = vunpack.c.h.b16 %v2133
        %v2174 = vunpack.c.l.b16 %v2134
        %v2175 = vunpack.c.h.b16 %v2134
        %v2176 = vunpack.c.l.b16 %v2135
        %v2177 = vunpack.c.h.b16 %v2135
        %v2178 = vunpack.c.l.b16 %v2136
        %v2179 = vunpack.c.h.b16 %v2136
        %v2180 = vunpack.c.l.b16 %v2137
        %v2181 = vunpack.c.h.b16 %v2137
        %v2182 = vunpack.c.l.b16 %v2138
        %v2183 = vunpack.c.h.b16 %v2138
        %v2184 = vunpack.c.l.b16 %v2139
        %v2185 = vunpack.c.h.b16 %v2139
        %v2186 = vunpack.c.l.b16 %v2140
        %v2187 = vunpack.c.h.b16 %v2140
        %v2188 = vunpack.c.l.b16 %v2141
        %v2189 = vunpack.c.h.b16 %v2141
        %v2190 = vpack.c.b16 %v2160, %v2158
        %v2191 = vpack.c.b16 %v2161, %v2159
        %v2192 = vpack.c.b16 %v2164, %v2162
        %v2193 = vpack.c.b16 %v2165, %v2163
        %v2194 = vpack.c.b16 %v2168, %v2166
        %v2195 = vpack.c.b16 %v2169, %v2167
        %v2196 = vpack.c.b16 %v2172, %v2170
        %v2197 = vpack.c.b16 %v2173, %v2171
        %v2198 = vpack.c.b16 %v2176, %v2174
        %v2199 = vpack.c.b16 %v2177, %v2175
        %v2200 = vpack.c.b16 %v2180, %v2178
        %v2201 = vpack.c.b16 %v2181, %v2179
        %v2202 = vpack.c.b16 %v2184, %v2182
        %v2203 = vpack.c.b16 %v2185, %v2183
        %v2204 = vpack.c.b16 %v2188, %v2186
        %v2205 = vpack.c.b16 %v2189, %v2187
        %2222 = vmatprep.subr.bf16.mxu0 %v2205
        %2223 = vmatpush1.bf16.msra.mxu0 %v2204
        %2224 = vmatprep.subr.bf16.mxu0 %v2203
        %2225 = vmatpush1.bf16.msra.mxu0 %v2202
        %2226 = vmatprep.subr.bf16.mxu0 %v2201
        %2227 = vmatpush1.bf16.msra.mxu0 %v2200
        %2228 = vmatprep.subr.bf16.mxu0 %v2199
        %2229 = vmatpush1.bf16.msra.mxu0 %v2198
        %2230 = vmatprep.subr.bf16.mxu0 %v2197
        %2231 = vmatpush1.bf16.msra.mxu0 %v2196
        %2232 = vmatprep.subr.bf16.mxu0 %v2195
        %2233 = vmatpush1.bf16.msra.mxu0 %v2194
        %2234 = vmatprep.subr.bf16.mxu0 %v2193
        %2235 = vmatpush1.bf16.msra.mxu0 %v2192
        %2236 = vmatprep.subr.bf16.mxu0 %v2191
        %2237 = vmatpush1.bf16.msra.mxu0 %v2190
        %2238 = vmatprep.subr.bf16.mxu0 0
        %2239 = vmatpush2.bf16.msra.mxu0 0
        %2240 = vmatprep.subr.bf16.mxu0 0
        %2241 = vmatpush2.bf16.msra.mxu0 0
        %2242 = vmatprep.subr.bf16.mxu0 0
        %2243 = vmatpush2.bf16.msra.mxu0 0
        %2244 = vmatprep.subr.bf16.mxu0 0
        %2245 = vmatpush2.bf16.msra.mxu0 0
        %2246 = vmatprep.subr.bf16.mxu0 0
        %2247 = vmatpush2.bf16.msra.mxu0 0
        %2248 = vmatprep.subr.bf16.mxu0 0
        %2249 = vmatpush2.bf16.msra.mxu0 0
        %2250 = vmatprep.subr.bf16.mxu0 0
        %2251 = vmatpush2.bf16.msra.mxu0 0
        %2252 = vmatprep.subr.bf16.mxu0 0
        %2253 = vmatpush2.bf16.msra.mxu0 0
        %2254 = vmatprep.mubr.bf16.mxu0 0
        %2255 = vmatmul.mubr.bf16.gmra.mxu0 %v393
        %v2256 = vpop.f32.mrf.mxu0
        %v2257 = vadd.f32 0.0, %v2256
        %v2258 = vpop.f32.mrf.mxu0
        %v2259 = vadd.f32 0.0, %v2258
        %v2260 = vpop.f32.mrf.mxu0
        %v2261 = vadd.f32 0.0, %v2260
        %v2262 = vpop.f32.mrf.mxu0
        %v2263 = vadd.f32 0.0, %v2262
        %2264 = vmatprep.mubr.bf16.mxu0 0
        %2265 = vmatmul.mubr.bf16.gmra.mxu0 %v394
        %v2266 = vpop.f32.mrf.mxu0
        %v2267 = vadd.f32 0.0, %v2266
        %v2268 = vpop.f32.mrf.mxu0
        %v2269 = vadd.f32 0.0, %v2268
        %v2270 = vpop.f32.mrf.mxu0
        %v2271 = vadd.f32 0.0, %v2270
        %v2272 = vpop.f32.mrf.mxu0
        %v2273 = vadd.f32 0.0, %v2272
        %2274 = vdwg.mxu0
        %v2275 = vmul.f32 %v2108, %v2257
        %v2276 = vmul.f32 %v2110, %v2259
        %v2277 = vmul.f32 %v2112, %v2261
        %v2278 = vmul.f32 %v2114, %v2263
        %v2279 = vmul.f32 %v2118, %v2267
        %v2280 = vmul.f32 %v2120, %v2269
        %v2281 = vmul.f32 %v2122, %v2271
        %v2282 = vmul.f32 %v2124, %v2273
        %v2283 = vpack.c.bf16 %v2277, %v2275
        %v2284 = vpack.c.bf16 %v2278, %v2276
        %v2285 = vpack.c.bf16 %v2281, %v2279
        %v2286 = vpack.c.bf16 %v2282, %v2280
        %v2287 = vld [vmem:[#allocation5 + $0x180] sm:$0xf]
        %v2288 = vld [vmem:[#allocation5 + $0x184] sm:$0xf]
        %v2289 = vld [vmem:[#allocation5 + $0x188] sm:$0xf]
        %v2290 = vld [vmem:[#allocation5 + $0x18c] sm:$0xf]
        %v2291 = vld [vmem:[#allocation5 + $0x190] sm:$0xf]
        %v2292 = vld [vmem:[#allocation5 + $0x194] sm:$0xf]
        %v2293 = vld [vmem:[#allocation5 + $0x198] sm:$0xf]
        %v2294 = vld [vmem:[#allocation5 + $0x19c] sm:$0xf]
        %v2295 = vld [vmem:[#allocation5 + $0x1a0] sm:$0xf]
        %v2296 = vld [vmem:[#allocation5 + $0x1a4] sm:$0xf]
        %v2297 = vld [vmem:[#allocation5 + $0x1a8] sm:$0xf]
        %v2298 = vld [vmem:[#allocation5 + $0x1ac] sm:$0xf]
        %v2299 = vld [vmem:[#allocation5 + $0x1b0] sm:$0xf]
        %v2300 = vld [vmem:[#allocation5 + $0x1b4] sm:$0xf]
        %v2301 = vld [vmem:[#allocation5 + $0x1b8] sm:$0xf]
        %v2302 = vld [vmem:[#allocation5 + $0x1bc] sm:$0xf]
        %v2303 = vld [vmem:[#allocation5 + $0x1c0] sm:$0xf]
        %v2304 = vld [vmem:[#allocation5 + $0x1c4] sm:$0xf]
        %v2305 = vld [vmem:[#allocation5 + $0x1c8] sm:$0xf]
        %v2306 = vld [vmem:[#allocation5 + $0x1cc] sm:$0xf]
        %v2307 = vld [vmem:[#allocation5 + $0x1d0] sm:$0xf]
        %v2308 = vld [vmem:[#allocation5 + $0x1d4] sm:$0xf]
        %v2309 = vld [vmem:[#allocation5 + $0x1d8] sm:$0xf]
        %v2310 = vld [vmem:[#allocation5 + $0x1dc] sm:$0xf]
        %v2311 = vld [vmem:[#allocation5 + $0x1e0] sm:$0xf]
        %v2312 = vld [vmem:[#allocation5 + $0x1e4] sm:$0xf]
        %v2313 = vld [vmem:[#allocation5 + $0x1e8] sm:$0xf]
        %v2314 = vld [vmem:[#allocation5 + $0x1ec] sm:$0xf]
        %v2315 = vld [vmem:[#allocation5 + $0x1f0] sm:$0xf]
        %v2316 = vld [vmem:[#allocation5 + $0x1f4] sm:$0xf]
        %v2317 = vld [vmem:[#allocation5 + $0x1f8] sm:$0xf]
        %v2318 = vld [vmem:[#allocation5 + $0x1fc] sm:$0xf]
        %v2351 = vunpack.c.l.b16 %v2287
        %v2352 = vunpack.c.l.b16 %v2288
        %v2353 = vunpack.c.l.b16 %v2289
        %v2354 = vunpack.c.l.b16 %v2290
        %v2355 = vunpack.c.l.b16 %v2291
        %v2356 = vunpack.c.l.b16 %v2292
        %v2357 = vunpack.c.l.b16 %v2293
        %v2358 = vunpack.c.l.b16 %v2294
        %v2359 = vunpack.c.l.b16 %v2295
        %v2360 = vunpack.c.l.b16 %v2296
        %v2361 = vunpack.c.l.b16 %v2297
        %v2362 = vunpack.c.l.b16 %v2298
        %v2363 = vunpack.c.l.b16 %v2299
        %v2364 = vunpack.c.l.b16 %v2300
        %v2365 = vunpack.c.l.b16 %v2301
        %v2366 = vunpack.c.l.b16 %v2302
        %v2367 = vunpack.c.l.b16 %v2303
        %v2368 = vunpack.c.l.b16 %v2304
        %v2369 = vunpack.c.l.b16 %v2305
        %v2370 = vunpack.c.l.b16 %v2306
        %v2371 = vunpack.c.l.b16 %v2307
        %v2372 = vunpack.c.l.b16 %v2308
        %v2373 = vunpack.c.l.b16 %v2309
        %v2374 = vunpack.c.l.b16 %v2310
        %v2375 = vunpack.c.l.b16 %v2311
        %v2376 = vunpack.c.l.b16 %v2312
        %v2377 = vunpack.c.l.b16 %v2313
        %v2378 = vunpack.c.l.b16 %v2314
        %v2379 = vunpack.c.l.b16 %v2315
        %v2380 = vunpack.c.l.b16 %v2316
        %v2381 = vunpack.c.l.b16 %v2317
        %v2382 = vunpack.c.l.b16 %v2318
        %v2383 = vpack.c.b16 %v2352, %v2351
        %v2384 = vpack.c.b16 %v2354, %v2353
        %v2385 = vpack.c.b16 %v2356, %v2355
        %v2386 = vpack.c.b16 %v2358, %v2357
        %v2387 = vpack.c.b16 %v2360, %v2359
        %v2388 = vpack.c.b16 %v2362, %v2361
        %v2389 = vpack.c.b16 %v2364, %v2363
        %v2390 = vpack.c.b16 %v2366, %v2365
        %v2391 = vpack.c.b16 %v2368, %v2367
        %v2392 = vpack.c.b16 %v2370, %v2369
        %v2393 = vpack.c.b16 %v2372, %v2371
        %v2394 = vpack.c.b16 %v2374, %v2373
        %v2395 = vpack.c.b16 %v2376, %v2375
        %v2396 = vpack.c.b16 %v2378, %v2377
        %v2397 = vpack.c.b16 %v2380, %v2379
        %v2398 = vpack.c.b16 %v2382, %v2381
        %2415 = vmatprep.subr.bf16.mxu0 0
        %2416 = vmatpush1.bf16.msra.mxu0 %v2390
        %2417 = vmatprep.subr.bf16.mxu0 0
        %2418 = vmatpush1.bf16.msra.mxu0 %v2389
        %2419 = vmatprep.subr.bf16.mxu0 0
        %2420 = vmatpush1.bf16.msra.mxu0 %v2388
        %2421 = vmatprep.subr.bf16.mxu0 0
        %2422 = vmatpush1.bf16.msra.mxu0 %v2387
        %2423 = vmatprep.subr.bf16.mxu0 0
        %2424 = vmatpush1.bf16.msra.mxu0 %v2386
        %2425 = vmatprep.subr.bf16.mxu0 0
        %2426 = vmatpush1.bf16.msra.mxu0 %v2385
        %2427 = vmatprep.subr.bf16.mxu0 0
        %2428 = vmatpush1.bf16.msra.mxu0 %v2384
        %2429 = vmatprep.subr.bf16.mxu0 0
        %2430 = vmatpush1.bf16.msra.mxu0 %v2383
        %2431 = vmatprep.subr.bf16.mxu0 0
        %2432 = vmatpush2.bf16.msra.mxu0 %v2398
        %2433 = vmatprep.subr.bf16.mxu0 0
        %2434 = vmatpush2.bf16.msra.mxu0 %v2397
        %2435 = vmatprep.subr.bf16.mxu0 0
        %2436 = vmatpush2.bf16.msra.mxu0 %v2396
        %2437 = vmatprep.subr.bf16.mxu0 0
        %2438 = vmatpush2.bf16.msra.mxu0 %v2395
        %2439 = vmatprep.subr.bf16.mxu0 0
        %2440 = vmatpush2.bf16.msra.mxu0 %v2394
        %2441 = vmatprep.subr.bf16.mxu0 0
        %2442 = vmatpush2.bf16.msra.mxu0 %v2393
        %2443 = vmatprep.subr.bf16.mxu0 0
        %2444 = vmatpush2.bf16.msra.mxu0 %v2392
        %2445 = vmatprep.subr.bf16.mxu0 0
        %2446 = vmatpush2.bf16.msra.mxu0 %v2391
        %2447 = vmatprep.mubr.bf16.mxu0 %v2284
        %2448 = vmatmul.mubr.bf16.gmra.mxu0 %v2283
        %v2449 = vpop.f32.mrf.mxu0
        %v2450 = vadd.f32 0.0, %v2449
        %v2451 = vpop.f32.mrf.mxu0
        %v2452 = vpop.f32.mrf.mxu0
        %v2453 = vadd.f32 0.0, %v2452
        %v2454 = vpop.f32.mrf.mxu0
        %2455 = vmatprep.mubr.bf16.mxu0 %v2286
        %2456 = vmatmul.mubr.bf16.gmra.mxu0 %v2285
        %v2457 = vpop.f32.mrf.mxu0
        %v2458 = vadd.f32 0.0, %v2457
        %v2459 = vpop.f32.mrf.mxu0
        %v2460 = vpop.f32.mrf.mxu0
        %v2461 = vadd.f32 0.0, %v2460
        %v2462 = vpop.f32.mrf.mxu0
        %2463 = vdwg.mxu0
        %v2464 = vadd.f32 %v1973, %v2450
        %v2465 = vadd.f32 %v1974, %v2453
        %v2466 = vadd.f32 %v1975, %v2458
        %v2467 = vadd.f32 %v1976, %v2461
        %v2468 = vxor.u32 %v2464, 2147483648
        %v2469 = vxor.u32 %v2465, 2147483648
        %v2470 = vxor.u32 %v2466, 2147483648
        %v2471 = vxor.u32 %v2467, 2147483648
        %v2472 = vmul.f32 %v2468, 1.442695
        %v2473 = vpow.pop %v2472
        %v2474 = vmul.f32 %v2469, 1.442695
        %v2475 = vpow.pop %v2474
        %v2476 = vmul.f32 %v2470, 1.442695
        %v2477 = vpow.pop %v2476
        %v2478 = vmul.f32 %v2471, 1.442695
        %v2479 = vpow.pop %v2478
        %v2480 = vadd.f32 %v2473, 1.0
        %v2481 = vadd.f32 %v2475, 1.0
        %v2482 = vadd.f32 %v2477, 1.0
        %v2483 = vadd.f32 %v2479, 1.0
        %v2484 = vrcp.pop %v2480
        %v2485 = vmul.f32 1.0, %v2484
        %v2486 = vrcp.pop %v2481
        %v2487 = vmul.f32 1.0, %v2486
        %v2488 = vrcp.pop %v2482
        %v2489 = vmul.f32 1.0, %v2488
        %v2490 = vrcp.pop %v2483
        %v2491 = vmul.f32 1.0, %v2490
        %v2492 = vmul.f32 %v2464, %v2485
        %v2493 = vmul.f32 %v2465, %v2487
        %v2494 = vmul.f32 %v2466, %v2489
        %v2495 = vmul.f32 %v2467, %v2491
        %v2496 = vld [vmem:[%s385] sm:$0xff]
        %v2497 = vld [vmem:[%s385 + $0x8] sm:$0xff]
        %v2498 = vld [vmem:[%s385 + $0x10] sm:$0xff]
        %v2499 = vld [vmem:[%s385 + $0x18] sm:$0xff]
        %v2500 = vld [vmem:[%s6] sm:$0xf]
        %v2501 = vld [vmem:[%s7] sm:$0x1]
        %v2503 = vlaneseq
        %v2504 = vshrl.u32 %v2503, 7
        %v2505 = vsub.s32 0, %v2504
        %v2506 = vrot.slane %v2501, %v2505
        %vm2508 = vcmask 31744
        %v2510 = vsel %vm2508, %v2496, 0
        %v2513 = vsel %vm2508, %v2497, 0
        %v2516 = vsel %vm2508, %v2498, 0
        %v2519 = vsel %vm2508, %v2499, 0
        %vm2521 = vcmask 1043456
        %v2523 = vsel %vm2521, %v2500, 0
        %2525 = vmatprep.subr.mxu0 0.0
        %2526 = vmatpush1.msra.mxu0 0.0
        %2527 = vmatprep.subr.mxu0 0.0
        %2528 = vmatpush1.msra.mxu0 0.0
        %2529 = vmatprep.subr.mxu0 0.0
        %2530 = vmatpush1.msra.mxu0 0.0
        %2531 = vmatprep.subr.mxu0 0.0
        %2532 = vmatpush1.msra.mxu0 0.0
        %2533 = vmatprep.subr.mxu0 0.0
        %2534 = vmatpush1.msra.mxu0 0.0
        %2535 = vmatprep.subr.mxu0 0.0
        %2536 = vmatpush1.msra.mxu0 0.0
        %2537 = vmatprep.subr.mxu0 0.0
        %2538 = vmatpush1.msra.mxu0 0.0
        %2539 = vmatprep.subr.mxu0 0.0
        %2540 = vmatpush1.msra.mxu0 0.0
        %2541 = vmatprep.subr.mxu0 0.0
        %2542 = vmatpush1.msra.mxu0 0.0
        %2543 = vmatprep.subr.mxu0 0.0
        %2544 = vmatpush1.msra.mxu0 0.0
        %2545 = vmatprep.subr.mxu0 0.0
        %2546 = vmatpush1.msra.mxu0 0.0
        %2547 = vmatprep.subr.mxu0 0.0
        %2548 = vmatpush1.msra.mxu0 0.0
        %2549 = vmatprep.subr.mxu0 0.0
        %2550 = vmatpush1.msra.mxu0 0.0
        %2551 = vmatprep.subr.mxu0 0.0
        %2552 = vmatpush1.msra.mxu0 0.0
        %2553 = vmatprep.subr.mxu0 0.0
        %2554 = vmatpush1.msra.mxu0 0.0
        %2555 = vmatprep.subr.mxu0 0.0
        %2556 = vmatpush1.msra.mxu0 %v2523
        %2557 = vmatprep.subr.mxu0 0.0
        %2558 = vmatpush2.msra.mxu0 0.0
        %2559 = vmatprep.subr.mxu0 0.0
        %2560 = vmatpush2.msra.mxu0 0.0
        %2561 = vmatprep.subr.mxu0 0.0
        %2562 = vmatpush2.msra.mxu0 0.0
        %2563 = vmatprep.subr.mxu0 0.0
        %2564 = vmatpush2.msra.mxu0 0.0
        %2565 = vmatprep.subr.mxu0 0.0
        %2566 = vmatpush2.msra.mxu0 0.0
        %2567 = vmatprep.subr.mxu0 0.0
        %2568 = vmatpush2.msra.mxu0 0.0
        %2569 = vmatprep.subr.mxu0 0.0
        %2570 = vmatpush2.msra.mxu0 0.0
        %2571 = vmatprep.subr.mxu0 0.0
        %2572 = vmatpush2.msra.mxu0 0.0
        %2573 = vmatprep.subr.mxu0 0.0
        %2574 = vmatpush2.msra.mxu0 0.0
        %2575 = vmatprep.subr.mxu0 0.0
        %2576 = vmatpush2.msra.mxu0 0.0
        %2577 = vmatprep.subr.mxu0 0.0
        %2578 = vmatpush2.msra.mxu0 0.0
        %2579 = vmatprep.subr.mxu0 0.0
        %2580 = vmatpush2.msra.mxu0 0.0
        %2581 = vmatprep.subr.mxu0 0.0
        %2582 = vmatpush2.msra.mxu0 0.0
        %2583 = vmatprep.subr.mxu0 0.0
        %2584 = vmatpush2.msra.mxu0 0.0
        %2585 = vmatprep.subr.mxu0 0.0
        %2586 = vmatpush2.msra.mxu0 0.0
        %2587 = vmatprep.subr.mxu0 0.0
        %2588 = vmatpush2.msra.mxu0 0.0
        %2589 = vmatprep.mubr.f32.mxu0 0.0
        %2590 = vmatmul.mubr.f32.gmra.mxu0 %v2510
        %v2591 = vpop.f32.mrf.mxu0
        %v2592 = vadd.f32 %v2506, %v2591
        %v2593 = vpop.f32.mrf.mxu0
        %2594 = vmatprep.mubr.f32.mxu0 0.0
        %2595 = vmatmul.mubr.f32.gmra.mxu0 %v2513
        %v2596 = vpop.f32.mrf.mxu0
        %v2597 = vadd.f32 %v2506, %v2596
        %v2598 = vpop.f32.mrf.mxu0
        %2599 = vmatprep.mubr.f32.mxu0 0.0
        %2600 = vmatmul.mubr.f32.gmra.mxu0 %v2516
        %v2601 = vpop.f32.mrf.mxu0
        %v2602 = vadd.f32 %v2506, %v2601
        %v2603 = vpop.f32.mrf.mxu0
        %2604 = vmatprep.mubr.f32.mxu0 0.0
        %2605 = vmatmul.mubr.f32.gmra.mxu0 %v2519
        %v2606 = vpop.f32.mrf.mxu0
        %v2607 = vadd.f32 %v2506, %v2606
        %v2608 = vpop.f32.mrf.mxu0
        %2609 = vdwg.mxu0
        %v2610 = vmul.f32 %v2492, %v2592
        %v2611 = vmul.f32 %v2493, %v2597
        %v2612 = vmul.f32 %v2494, %v2602
        %v2613 = vmul.f32 %v2495, %v2607
        %2614 = vst [vmem:[%s374] sm:$0xff] %v2610
        %2615 = vst [vmem:[%s374 + $0x8] sm:$0xff] %v2611
        %2616 = vst [vmem:[%s374 + $0x10] sm:$0xff] %v2612
        %2617 = vst [vmem:[%s374 + $0x18] sm:$0xff] %v2613
        %s2618 = sand.u32 %s211, 1
        %s2619 = scalar_lea.sflag [#allocation4], %s2618
        %s2620 = sand.u32 %s211, 1
        %s2621 = smul.addr %s2620, 32
        %s2622 = scalar_lea.vmem [#allocation10], %s2621
        // Predicated region
        $region69: #{tpu_custom_call.1} parent=51 // pred_check
          %p2623 = pneg %p221
        $region70: #{tpu_custom_call.1} parent=51 // pred_check_branch
          %2625 = sbr.rel (%p2623) target = $region72
        $region71: #{tpu_custom_call.1} parent=51 // pred_region
          %s2626 = smul.u32 4, %s25
          %s2628 = ssub.s32 512, 512
          %2629 = vsyncadd %s2619, %s2628
          %s2630 = smul.addr %s2626, 128
          %s2631 = scalar_lea.hbm %s8, %s2630
          %s2632 = sshll.u32 %s2622, 4
          %s2633 = int_to_ptr.vmem [resolvable:$true] %s2632
          %2638 = dma.vmem_to_hbm [thread:$0]  %s2633, 512, %s2631, %s2619, 128, 128, 8
        $region72: #{tpu_custom_call.1} parent=51 // pred_fallthru
          _
      $region52: #{tpu_custom_call.1} parent=5 // pred_fallthru
        _
      %p2639 = scmp.le.s32.totalorder 2, %s20
      // Predicated region
      $region73: #{tpu_custom_call.1} parent=5 // pred_check
        %p2640 = pneg %p2639
      $region74: #{tpu_custom_call.1} parent=5 // pred_check_branch
        %2642 = sbr.rel (%p2640) target = $region76
      $region75: #{tpu_custom_call.1} parent=5 // pred_region
        %s2643 = ssub.s32 %s20, 2
        // Predicated region
        $region77: #{tpu_custom_call.1} parent=75 // pred_check
          %p2644 = pneg %p227
        $region78: #{tpu_custom_call.1} parent=75 // pred_check_branch
          %2646 = sbr.rel (%p2644) target = $region80
        $region79: #{tpu_custom_call.1} parent=75 // pred_region
          %s2647 = sand.u32 %s212, 1
          %s2648 = scalar_lea.sflag [#allocation4], %s2647
          %s2649 = sand.u32 %s212, 1
          %s2650 = smul.addr %s2649, 32
          %s2651 = scalar_lea.vmem [#allocation10], %s2650
          %2652 = dma.done %s2648, 512
        $region80: #{tpu_custom_call.1} parent=75 // pred_fallthru
          _
      $region76: #{tpu_custom_call.1} parent=5 // pred_fallthru
        _
    $region6: #{tpu_custom_call.1} parent=1 // loop_footer
      %s24 = sadd.s32 1, %s20
    $region7: #{tpu_custom_call.1} parent=1 // loop_footer_branch
      %19 = sbr.rel target = $region3
    $region8: #{tpu_custom_call.1} parent=1 // loop_exit
      _
    %2653 = vsyncpa [#allocation3], 1
    %s2654 = scalar_lea.sflag [#allocation3], 1
    %2655 = vsyncpa %s2654, 1
    %2656 = vsyncpa [#allocation6], 1
    %2657 = vsyncpa [#allocation9], 1
    %2658 = vsyncpa [#allocation4], 1
    %s2659 = scalar_lea.sflag [#allocation4], 1
    %2660 = vsyncpa %s2659, 1

</llo_original>
